<compile_context>
chip_gen: v7x
topology: tpu7x:2x2x1
jax: 0.10.0
libtpu: 0.0.40
codegen_flags: <defaults>
</compile_context>

<pallas_src>
import jax
import jax.numpy as jnp
import numpy as np
from jax.experimental import pallas as pl
from jax.experimental.pallas import tpu as pltpu

K = 5                 # conv kernel size (both convs)
GRID = 16             # per-sample row stride in lane space
PS = GRID * GRID      # 256 lanes per sample (multiple of 128)

# static lane-shift tables
_CONV2_SHIFTS = [GRID * kh + kw for kh in range(K) for kw in range(K)]          # 25
_POOL2_SHIFTS = [0, 1, GRID, GRID + 1]                                          # 2x2 window
_FC1_SHIFTS = [2 * GRID * ph + 2 * pw for ph in range(4) for pw in range(4)]    # 16 pooled pos


# ----------------------------------------------------------------------------
# Fused kernel: whole forward pass for one sample, all data VMEM resident
# ----------------------------------------------------------------------------
def _mnist_fused_kernel(p1_ref, w1_ref, b1_ref, w2_ref, b2_ref,
                        wf1_ref, bf1_ref, wf2_ref, bf2_ref, o_ref):
    # p1_ref : (1, 25, 4*PS) conv1 im2col patches, lane = a*PS + 16*i + j
    # w1_ref : (16, 25)   conv1 weight (out-channels padded 10->16 with zeros)
    # w2_ref : (32, 400)  conv2 weight over (k-major, 16-channel) patch rows
    # wf1_ref: (H, 512)   fc1 weight over (pool-pos-major, 32-channel) patch rows
    # wf2_ref: (C, H)     fc2 weight
    # o_ref  : (1, C, PS) log-probs, valid at lane 0 of the sample block

    # ---- conv1 + 2x2 max-pool + relu (pool offsets folded into 4 slabs) -----
    c1 = jnp.dot(w1_ref[...], p1_ref[0], preferred_element_type=jnp.float32)   # (16, 4*PS)
    m = jnp.maximum(jnp.maximum(c1[:, 0:PS], c1[:, PS:2 * PS]),
                    jnp.maximum(c1[:, 2 * PS:3 * PS], c1[:, 3 * PS:4 * PS]))
    h1 = jnp.maximum(m + b1_ref[...], 0.0)                                      # (16, PS)

    # ---- conv2: in-register im2col (25 static lane rolls) + one MXU matmul --
    pat2 = jnp.concatenate(
        [h1 if d == 0 else jnp.roll(h1, -d, axis=1) for d in _CONV2_SHIFTS],
        axis=0)                                                                 # (400, PS)
    y2 = jnp.dot(w2_ref[...], pat2, preferred_element_type=jnp.float32)
    y2 = y2 + b2_ref[...]                                                       # (32, PS)
    # TODO(synk): nn.Dropout2d treated as identity (inference mode).

    # ---- 2x2 max-pool (stride 2) via rolls, then relu -----------------------
    p2 = y2
    for d in _POOL2_SHIFTS[1:]:
        p2 = jnp.maximum(p2, jnp.roll(y2, -d, axis=1))
    p2 = jnp.maximum(p2, 0.0)                                                   # (32, PS)

    # ---- fc1 + relu: flatten folded into 16 rolled copies + one matmul ------
    pat3 = jnp.concatenate(
        [p2 if d == 0 else jnp.roll(p2, -d, axis=1) for d in _FC1_SHIFTS],
        axis=0)                                                                 # (512, PS)
    z1 = jnp.dot(wf1_ref[...], pat3, preferred_element_type=jnp.float32)
    z1 = jnp.maximum(z1 + bf1_ref[...], 0.0)                                    # (H, PS)
    # TODO(synk): F.dropout treated as identity (inference mode).

    # ---- fc2 + log_softmax over the class (sublane) axis --------------------
    z2 = jnp.dot(wf2_ref[...], z1, preferred_element_type=jnp.float32)
    z2 = z2 + bf2_ref[...]                                                      # (C, PS)
    mx = jnp.max(z2, axis=0, keepdims=True)
    s = z2 - mx
    o_ref[0] = s - jnp.log(jnp.sum(jnp.exp(s), axis=0, keepdims=True))


# ----------------------------------------------------------------------------
# Wrapper-side data preparation (operates only on the tiny raw input / weights)
# ----------------------------------------------------------------------------
def _conv1_pool_patches(x):
    """(N,1,28,28) -> (N, 25, 4*PS); lane = a*PS + 16*i + j with
    value = x[n, 0, 2*i + ah + kh, 2*j + aw + kw]  (a = 2*ah + aw)."""
    N = x.shape[0]
    xs = x[:, 0]
    slabs = []
    for kh in range(K):
        for kw in range(K):
            for ah in range(2):
                for aw in range(2):
                    slabs.append(xs[:, ah + kh: ah + kh + 24: 2,
                                       aw + kw: aw + kw + 24: 2])     # (N, 12, 12)
    pat = jnp.stack(slabs, axis=1).reshape(N, K * K, 4, 12, 12)
    pat = jnp.pad(pat, ((0, 0), (0, 0), (0, 0), (0, GRID - 12), (0, GRID - 12)))
    return pat.reshape(N, K * K, 4 * PS)


def _pack_params(params):
    """Zero-pad / reorder weights to match the kernel's patch-row layouts."""
    w1, b1, w2, b2, fw1, fb1, fw2, fb2 = params
    f32 = jnp.float32
    H = fw1.shape[0]                 # 50
    C = fw2.shape[0]                 # num_classes

    w1p = jnp.zeros((16, 25), f32).at[:10].set(w1.reshape(10, 25).astype(f32))
    b1p = jnp.zeros((16, 1), f32).at[:10, 0].set(b1.astype(f32))

    # conv2: patch row = k*16 + c  (k = kh*5 + kw, channel c padded 10->16)
    w2k = w2.astype(f32).transpose(0, 2, 3, 1).reshape(20, 25, 10)
    w2p = jnp.zeros((32, 25, 16), f32).at[:20, :, :10].set(w2k).reshape(32, 400)
    b2p = jnp.zeros((32, 1), f32).at[:20, 0].set(b2.astype(f32))

    # fc1: patch row = p*32 + c  (p = ph*4 + pw pooled position, c padded 20->32)
    wf1 = jnp.zeros((H, 16, 32), f32).at[:, :, :20].set(
        fw1.astype(f32).reshape(H, 20, 16).transpose(0, 2, 1)).reshape(H, 512)
    bf1 = fb1.astype(f32).reshape(H, 1)

    wf2 = fw2.astype(f32)                       # (C, H)
    bf2 = fb2.astype(f32).reshape(C, 1)
    return w1p, b1p, w2p, b2p, wf1, bf1, wf2, bf2


def mnist_forward(x, params):
    x = x.astype(jnp.float32)
    N = x.shape[0]
    H = params[4].shape[0]
    C = params[6].shape[0]

    p1 = _conv1_pool_patches(x)                                   # (N, 25, 4*PS)
    w1p, b1p, w2p, b2p, wf1, bf1, wf2, bf2 = _pack_params(params)

    flops = 2 * N * (16 * 25 * 4 * PS + 32 * 400 * PS + H * 512 * PS + C * H * PS)
    bytes_accessed = 4 * (p1.size + w1p.size + b1p.size + w2p.size + b2p.size
                          + wf1.size + bf1.size + wf2.size + bf2.size + N * C * PS)
    cost = pl.CostEstimate(flops=flops,
                           transcendentals=N * (C + 1) * PS,
                           bytes_accessed=bytes_accessed)

    out_full = pl.pallas_call(
        _mnist_fused_kernel,
        out_shape=jax.ShapeDtypeStruct((N, C, PS), jnp.float32),
        grid=(N,),
        in_specs=[
            pl.BlockSpec((1, 25, 4 * PS), lambda n: (n, 0, 0)),
            pl.BlockSpec((16, 25), lambda n: (0, 0)),
            pl.BlockSpec((16, 1), lambda n: (0, 0)),
            pl.BlockSpec((32, 400), lambda n: (0, 0)),
            pl.BlockSpec((32, 1), lambda n: (0, 0)),
            pl.BlockSpec((H, 512), lambda n: (0, 0)),
            pl.BlockSpec((H, 1), lambda n: (0, 0)),
            pl.BlockSpec((C, H), lambda n: (0, 0)),
            pl.BlockSpec((C, 1), lambda n: (0, 0)),
        ],
        out_specs=pl.BlockSpec((1, C, PS), lambda n: (n, 0, 0)),
        compiler_params=pltpu.CompilerParams(dimension_semantics=("parallel",)),
        cost_estimate=cost,
    )(p1, w1p, b1p, w2p, b2p, wf1, bf1, wf2, bf2)

    return out_full[:, :, 0]                                      # (N, C) log-probs


# ----------------------------------------------------------------------------
# Pure-XLA reference for the self-check
# ----------------------------------------------------------------------------
def mnist_reference(x, params):
    (w1, b1, w2, b2, fw1, fb1, fw2, fb2) = params
    dn = ("NCHW", "OIHW", "NCHW")
    hp = jax.lax.Precision.HIGHEST
    y = jax.lax.conv_general_dilated(x, w1, (1, 1), "VALID",
                                     dimension_numbers=dn, precision=hp)
    y = y + b1[None, :, None, None]
    y = jax.lax.reduce_window(y, -jnp.inf, jax.lax.max, (1, 1, 2, 2), (1, 1, 2, 2), "VALID")
    y = jnp.maximum(y, 0.0)
    y = jax.lax.conv_general_dilated(y, w2, (1, 1), "VALID",
                                     dimension_numbers=dn, precision=hp)
    y = y + b2[None, :, None, None]
    y = jax.lax.reduce_window(y, -jnp.inf, jax.lax.max, (1, 1, 2, 2), (1, 1, 2, 2), "VALID")
    y = jnp.maximum(y, 0.0)
    y = y.reshape(y.shape[0], -1)
    y = jnp.maximum(jnp.dot(y, fw1.T, precision=hp) + fb1, 0.0)
    y = jnp.dot(y, fw2.T, precision=hp) + fb2
    return jax.nn.log_softmax(y, axis=1)


if __name__ == "__main__":
    num_classes = 10
    key = jax.random.PRNGKey(0)
    kx, k1, k2, k3, k4, k5, k6, k7, k8 = jax.random.split(key, 9)
    params = (
        0.2 * jax.random.normal(k1, (10, 1, 5, 5), jnp.float32),      # conv1.weight
        0.1 * jax.random.normal(k2, (10,), jnp.float32),              # conv1.bias
        0.2 * jax.random.normal(k3, (20, 10, 5, 5), jnp.float32),     # conv2.weight
        0.1 * jax.random.normal(k4, (20,), jnp.float32),              # conv2.bias
        0.1 * jax.random.normal(k5, (50, 320), jnp.float32),          # fc1.weight
        0.1 * jax.random.normal(k6, (50,), jnp.float32),              # fc1.bias
        0.1 * jax.random.normal(k7, (num_classes, 50), jnp.float32),  # fc2.weight
        0.1 * jax.random.normal(k8, (num_classes,), jnp.float32),     # fc2.bias
    )
    # MNIST-shaped input (fc1 in_features=320 implies 1x28x28), small batch.
    x = jax.random.normal(kx, (2, 1, 28, 28), jnp.float32)

    out = jax.jit(mnist_forward)(x, params)
    out = jax.block_until_ready(out)
    assert out.shape == (2, num_classes)

    ref = jax.block_until_ready(mnist_reference(x, params))
    np.testing.assert_allclose(np.asarray(out), np.asarray(ref), rtol=1e-2, atol=1e-2)

    print("KERNEL_OK")
</pallas_src>

<mosaic_0001>
module attributes {stable_mosaic.version = 11 : i64} {
  func.func @_mnist_fused_kernel(%arg0: i32, %arg1: memref<1x25x1024xf32, #tpu.memory_space<vmem>>, %arg2: memref<16x25xf32, #tpu.memory_space<vmem>>, %arg3: memref<16x1xf32, #tpu.memory_space<vmem>>, %arg4: memref<32x400xf32, #tpu.memory_space<vmem>>, %arg5: memref<32x1xf32, #tpu.memory_space<vmem>>, %arg6: memref<50x512xf32, #tpu.memory_space<vmem>>, %arg7: memref<50x1xf32, #tpu.memory_space<vmem>>, %arg8: memref<10x50xf32, #tpu.memory_space<vmem>>, %arg9: memref<10x1xf32, #tpu.memory_space<vmem>>, %arg10: memref<1x10x256xf32, #tpu.memory_space<vmem>>) attributes {dimension_semantics = [#tpu.dimension_semantics<parallel>], iteration_bounds = array<i64: 2>, scalar_prefetch = 0 : i64, scratch_operands = 0 : i64, tpu.core_type = #tpu.core_type<tc>, window_params = [{transform_indices = @transform_0, window_bounds = array<i64: 1, 25, 1024>}, {pipeline_mode = #tpu.pipeline_mode<synchronous>, transform_indices = @transform_1, window_bounds = array<i64: 16, 25>}, {pipeline_mode = #tpu.pipeline_mode<synchronous>, transform_indices = @transform_2, window_bounds = array<i64: 16, 1>}, {pipeline_mode = #tpu.pipeline_mode<synchronous>, transform_indices = @transform_3, window_bounds = array<i64: 32, 400>}, {pipeline_mode = #tpu.pipeline_mode<synchronous>, transform_indices = @transform_4, window_bounds = array<i64: 32, 1>}, {pipeline_mode = #tpu.pipeline_mode<synchronous>, transform_indices = @transform_5, window_bounds = array<i64: 50, 512>}, {pipeline_mode = #tpu.pipeline_mode<synchronous>, transform_indices = @transform_6, window_bounds = array<i64: 50, 1>}, {pipeline_mode = #tpu.pipeline_mode<synchronous>, transform_indices = @transform_7, window_bounds = array<i64: 10, 50>}, {pipeline_mode = #tpu.pipeline_mode<synchronous>, transform_indices = @transform_8, window_bounds = array<i64: 10, 1>}, {transform_indices = @transform_9, window_bounds = array<i64: 1, 10, 256>}]} {
    %c0 = arith.constant 0 : index
    %c0_0 = arith.constant 0 : index
    %0 = vector.load %arg2[%c0, %c0_0] : memref<16x25xf32, #tpu.memory_space<vmem>>, vector<16x25xf32>
    %c0_1 = arith.constant 0 : index
    %c0_2 = arith.constant 0 : index
    %c0_3 = arith.constant 0 : index
    %1 = vector.load %arg1[%c0_1, %c0_2, %c0_3] : memref<1x25x1024xf32, #tpu.memory_space<vmem>>, vector<1x25x1024xf32>
    %2 = vector.shape_cast %1 : vector<1x25x1024xf32> to vector<25x1024xf32>
    %cst = arith.constant dense<0.000000e+00> : vector<16x1024xf32>
    %3 = tpu.matmul %0, %2, %cst {dimension_numbers = #tpu.dot_dimension_numbers<[1], [0], [0], [1], [0, 0, 1, 1], [], []>} : vector<16x25xf32>, vector<25x1024xf32>, vector<16x1024xf32> -> vector<16x1024xf32>
    %4 = vector.extract_strided_slice %3 {offsets = [0, 0], sizes = [16, 256], strides = [1, 1]} : vector<16x1024xf32> to vector<16x256xf32>
    %5 = vector.extract_strided_slice %3 {offsets = [0, 256], sizes = [16, 256], strides = [1, 1]} : vector<16x1024xf32> to vector<16x256xf32>
    %6 = arith.maximumf %4, %5 : vector<16x256xf32>
    %7 = vector.extract_strided_slice %3 {offsets = [0, 512], sizes = [16, 256], strides = [1, 1]} : vector<16x1024xf32> to vector<16x256xf32>
    %8 = vector.extract_strided_slice %3 {offsets = [0, 768], sizes = [16, 256], strides = [1, 1]} : vector<16x1024xf32> to vector<16x256xf32>
    %9 = arith.maximumf %7, %8 : vector<16x256xf32>
    %10 = arith.maximumf %6, %9 : vector<16x256xf32>
    %c0_4 = arith.constant 0 : index
    %c0_5 = arith.constant 0 : index
    %11 = vector.load %arg3[%c0_4, %c0_5] : memref<16x1xf32, #tpu.memory_space<vmem>>, vector<16x1xf32>
    %12 = vector.broadcast %11 : vector<16x1xf32> to vector<16x256xf32>
    %13 = arith.addf %10, %12 : vector<16x256xf32>
    %cst_6 = arith.constant 0.000000e+00 : f32
    %14 = vector.broadcast %cst_6 : f32 to vector<16x256xf32>
    %15 = arith.maximumf %13, %14 : vector<16x256xf32>
    %16 = vector.extract_strided_slice %15 {offsets = [0, 1], sizes = [16, 255], strides = [1, 1]} : vector<16x256xf32> to vector<16x255xf32>
    %17 = vector.extract_strided_slice %15 {offsets = [0, 0], sizes = [16, 1], strides = [1, 1]} : vector<16x256xf32> to vector<16x1xf32>
    %18 = tpu.concatenate %16, %17 in 1 : vector<16x255xf32>, vector<16x1xf32> -> vector<16x256xf32>
    %19 = vector.extract_strided_slice %15 {offsets = [0, 2], sizes = [16, 254], strides = [1, 1]} : vector<16x256xf32> to vector<16x254xf32>
    %20 = vector.extract_strided_slice %15 {offsets = [0, 0], sizes = [16, 2], strides = [1, 1]} : vector<16x256xf32> to vector<16x2xf32>
    %21 = tpu.concatenate %19, %20 in 1 : vector<16x254xf32>, vector<16x2xf32> -> vector<16x256xf32>
    %22 = vector.extract_strided_slice %15 {offsets = [0, 3], sizes = [16, 253], strides = [1, 1]} : vector<16x256xf32> to vector<16x253xf32>
    %23 = vector.extract_strided_slice %15 {offsets = [0, 0], sizes = [16, 3], strides = [1, 1]} : vector<16x256xf32> to vector<16x3xf32>
    %24 = tpu.concatenate %22, %23 in 1 : vector<16x253xf32>, vector<16x3xf32> -> vector<16x256xf32>
    %25 = vector.extract_strided_slice %15 {offsets = [0, 4], sizes = [16, 252], strides = [1, 1]} : vector<16x256xf32> to vector<16x252xf32>
    %26 = vector.extract_strided_slice %15 {offsets = [0, 0], sizes = [16, 4], strides = [1, 1]} : vector<16x256xf32> to vector<16x4xf32>
    %27 = tpu.concatenate %25, %26 in 1 : vector<16x252xf32>, vector<16x4xf32> -> vector<16x256xf32>
    %28 = vector.extract_strided_slice %15 {offsets = [0, 16], sizes = [16, 240], strides = [1, 1]} : vector<16x256xf32> to vector<16x240xf32>
    %29 = vector.extract_strided_slice %15 {offsets = [0, 0], sizes = [16, 16], strides = [1, 1]} : vector<16x256xf32> to vector<16x16xf32>
    %30 = tpu.concatenate %28, %29 in 1 : vector<16x240xf32>, vector<16x16xf32> -> vector<16x256xf32>
    %31 = vector.extract_strided_slice %15 {offsets = [0, 17], sizes = [16, 239], strides = [1, 1]} : vector<16x256xf32> to vector<16x239xf32>
    %32 = vector.extract_strided_slice %15 {offsets = [0, 0], sizes = [16, 17], strides = [1, 1]} : vector<16x256xf32> to vector<16x17xf32>
    %33 = tpu.concatenate %31, %32 in 1 : vector<16x239xf32>, vector<16x17xf32> -> vector<16x256xf32>
    %34 = vector.extract_strided_slice %15 {offsets = [0, 18], sizes = [16, 238], strides = [1, 1]} : vector<16x256xf32> to vector<16x238xf32>
    %35 = vector.extract_strided_slice %15 {offsets = [0, 0], sizes = [16, 18], strides = [1, 1]} : vector<16x256xf32> to vector<16x18xf32>
    %36 = tpu.concatenate %34, %35 in 1 : vector<16x238xf32>, vector<16x18xf32> -> vector<16x256xf32>
    %37 = vector.extract_strided_slice %15 {offsets = [0, 19], sizes = [16, 237], strides = [1, 1]} : vector<16x256xf32> to vector<16x237xf32>
    %38 = vector.extract_strided_slice %15 {offsets = [0, 0], sizes = [16, 19], strides = [1, 1]} : vector<16x256xf32> to vector<16x19xf32>
    %39 = tpu.concatenate %37, %38 in 1 : vector<16x237xf32>, vector<16x19xf32> -> vector<16x256xf32>
    %40 = vector.extract_strided_slice %15 {offsets = [0, 20], sizes = [16, 236], strides = [1, 1]} : vector<16x256xf32> to vector<16x236xf32>
    %41 = vector.extract_strided_slice %15 {offsets = [0, 0], sizes = [16, 20], strides = [1, 1]} : vector<16x256xf32> to vector<16x20xf32>
    %42 = tpu.concatenate %40, %41 in 1 : vector<16x236xf32>, vector<16x20xf32> -> vector<16x256xf32>
    %43 = vector.extract_strided_slice %15 {offsets = [0, 32], sizes = [16, 224], strides = [1, 1]} : vector<16x256xf32> to vector<16x224xf32>
    %44 = vector.extract_strided_slice %15 {offsets = [0, 0], sizes = [16, 32], strides = [1, 1]} : vector<16x256xf32> to vector<16x32xf32>
    %45 = tpu.concatenate %43, %44 in 1 : vector<16x224xf32>, vector<16x32xf32> -> vector<16x256xf32>
    %46 = vector.extract_strided_slice %15 {offsets = [0, 33], sizes = [16, 223], strides = [1, 1]} : vector<16x256xf32> to vector<16x223xf32>
    %47 = vector.extract_strided_slice %15 {offsets = [0, 0], sizes = [16, 33], strides = [1, 1]} : vector<16x256xf32> to vector<16x33xf32>
    %48 = tpu.concatenate %46, %47 in 1 : vector<16x223xf32>, vector<16x33xf32> -> vector<16x256xf32>
    %49 = vector.extract_strided_slice %15 {offsets = [0, 34], sizes = [16, 222], strides = [1, 1]} : vector<16x256xf32> to vector<16x222xf32>
    %50 = vector.extract_strided_slice %15 {offsets = [0, 0], sizes = [16, 34], strides = [1, 1]} : vector<16x256xf32> to vector<16x34xf32>
    %51 = tpu.concatenate %49, %50 in 1 : vector<16x222xf32>, vector<16x34xf32> -> vector<16x256xf32>
    %52 = vector.extract_strided_slice %15 {offsets = [0, 35], sizes = [16, 221], strides = [1, 1]} : vector<16x256xf32> to vector<16x221xf32>
    %53 = vector.extract_strided_slice %15 {offsets = [0, 0], sizes = [16, 35], strides = [1, 1]} : vector<16x256xf32> to vector<16x35xf32>
    %54 = tpu.concatenate %52, %53 in 1 : vector<16x221xf32>, vector<16x35xf32> -> vector<16x256xf32>
    %55 = vector.extract_strided_slice %15 {offsets = [0, 36], sizes = [16, 220], strides = [1, 1]} : vector<16x256xf32> to vector<16x220xf32>
    %56 = vector.extract_strided_slice %15 {offsets = [0, 0], sizes = [16, 36], strides = [1, 1]} : vector<16x256xf32> to vector<16x36xf32>
    %57 = tpu.concatenate %55, %56 in 1 : vector<16x220xf32>, vector<16x36xf32> -> vector<16x256xf32>
    %58 = vector.extract_strided_slice %15 {offsets = [0, 48], sizes = [16, 208], strides = [1, 1]} : vector<16x256xf32> to vector<16x208xf32>
    %59 = vector.extract_strided_slice %15 {offsets = [0, 0], sizes = [16, 48], strides = [1, 1]} : vector<16x256xf32> to vector<16x48xf32>
    %60 = tpu.concatenate %58, %59 in 1 : vector<16x208xf32>, vector<16x48xf32> -> vector<16x256xf32>
    %61 = vector.extract_strided_slice %15 {offsets = [0, 49], sizes = [16, 207], strides = [1, 1]} : vector<16x256xf32> to vector<16x207xf32>
    %62 = vector.extract_strided_slice %15 {offsets = [0, 0], sizes = [16, 49], strides = [1, 1]} : vector<16x256xf32> to vector<16x49xf32>
    %63 = tpu.concatenate %61, %62 in 1 : vector<16x207xf32>, vector<16x49xf32> -> vector<16x256xf32>
    %64 = vector.extract_strided_slice %15 {offsets = [0, 50], sizes = [16, 206], strides = [1, 1]} : vector<16x256xf32> to vector<16x206xf32>
    %65 = vector.extract_strided_slice %15 {offsets = [0, 0], sizes = [16, 50], strides = [1, 1]} : vector<16x256xf32> to vector<16x50xf32>
    %66 = tpu.concatenate %64, %65 in 1 : vector<16x206xf32>, vector<16x50xf32> -> vector<16x256xf32>
    %67 = vector.extract_strided_slice %15 {offsets = [0, 51], sizes = [16, 205], strides = [1, 1]} : vector<16x256xf32> to vector<16x205xf32>
    %68 = vector.extract_strided_slice %15 {offsets = [0, 0], sizes = [16, 51], strides = [1, 1]} : vector<16x256xf32> to vector<16x51xf32>
    %69 = tpu.concatenate %67, %68 in 1 : vector<16x205xf32>, vector<16x51xf32> -> vector<16x256xf32>
    %70 = vector.extract_strided_slice %15 {offsets = [0, 52], sizes = [16, 204], strides = [1, 1]} : vector<16x256xf32> to vector<16x204xf32>
    %71 = vector.extract_strided_slice %15 {offsets = [0, 0], sizes = [16, 52], strides = [1, 1]} : vector<16x256xf32> to vector<16x52xf32>
    %72 = tpu.concatenate %70, %71 in 1 : vector<16x204xf32>, vector<16x52xf32> -> vector<16x256xf32>
    %73 = vector.extract_strided_slice %15 {offsets = [0, 64], sizes = [16, 192], strides = [1, 1]} : vector<16x256xf32> to vector<16x192xf32>
    %74 = vector.extract_strided_slice %15 {offsets = [0, 0], sizes = [16, 64], strides = [1, 1]} : vector<16x256xf32> to vector<16x64xf32>
    %75 = tpu.concatenate %73, %74 in 1 : vector<16x192xf32>, vector<16x64xf32> -> vector<16x256xf32>
    %76 = vector.extract_strided_slice %15 {offsets = [0, 65], sizes = [16, 191], strides = [1, 1]} : vector<16x256xf32> to vector<16x191xf32>
    %77 = vector.extract_strided_slice %15 {offsets = [0, 0], sizes = [16, 65], strides = [1, 1]} : vector<16x256xf32> to vector<16x65xf32>
    %78 = tpu.concatenate %76, %77 in 1 : vector<16x191xf32>, vector<16x65xf32> -> vector<16x256xf32>
    %79 = vector.extract_strided_slice %15 {offsets = [0, 66], sizes = [16, 190], strides = [1, 1]} : vector<16x256xf32> to vector<16x190xf32>
    %80 = vector.extract_strided_slice %15 {offsets = [0, 0], sizes = [16, 66], strides = [1, 1]} : vector<16x256xf32> to vector<16x66xf32>
    %81 = tpu.concatenate %79, %80 in 1 : vector<16x190xf32>, vector<16x66xf32> -> vector<16x256xf32>
    %82 = vector.extract_strided_slice %15 {offsets = [0, 67], sizes = [16, 189], strides = [1, 1]} : vector<16x256xf32> to vector<16x189xf32>
    %83 = vector.extract_strided_slice %15 {offsets = [0, 0], sizes = [16, 67], strides = [1, 1]} : vector<16x256xf32> to vector<16x67xf32>
    %84 = tpu.concatenate %82, %83 in 1 : vector<16x189xf32>, vector<16x67xf32> -> vector<16x256xf32>
    %85 = vector.extract_strided_slice %15 {offsets = [0, 68], sizes = [16, 188], strides = [1, 1]} : vector<16x256xf32> to vector<16x188xf32>
    %86 = vector.extract_strided_slice %15 {offsets = [0, 0], sizes = [16, 68], strides = [1, 1]} : vector<16x256xf32> to vector<16x68xf32>
    %87 = tpu.concatenate %85, %86 in 1 : vector<16x188xf32>, vector<16x68xf32> -> vector<16x256xf32>
    %88 = tpu.concatenate %15, %18, %21, %24, %27, %30, %33, %36, %39, %42, %45, %48, %51, %54, %57, %60 in 0 : vector<16x256xf32>, vector<16x256xf32>, vector<16x256xf32>, vector<16x256xf32>, vector<16x256xf32>, vector<16x256xf32>, vector<16x256xf32>, vector<16x256xf32>, vector<16x256xf32>, vector<16x256xf32>, vector<16x256xf32>, vector<16x256xf32>, vector<16x256xf32>, vector<16x256xf32>, vector<16x256xf32>, vector<16x256xf32> -> vector<256x256xf32>
    %89 = tpu.concatenate %63, %66, %69, %72, %75, %78, %81, %84, %87 in 0 : vector<16x256xf32>, vector<16x256xf32>, vector<16x256xf32>, vector<16x256xf32>, vector<16x256xf32>, vector<16x256xf32>, vector<16x256xf32>, vector<16x256xf32>, vector<16x256xf32> -> vector<144x256xf32>
    %90 = tpu.concatenate %88, %89 in 0 : vector<256x256xf32>, vector<144x256xf32> -> vector<400x256xf32>
    %c0_7 = arith.constant 0 : index
    %c0_8 = arith.constant 0 : index
    %91 = vector.load %arg4[%c0_7, %c0_8] : memref<32x400xf32, #tpu.memory_space<vmem>>, vector<32x400xf32>
    %cst_9 = arith.constant dense<0.000000e+00> : vector<32x256xf32>
    %92 = tpu.matmul %91, %90, %cst_9 {dimension_numbers = #tpu.dot_dimension_numbers<[1], [0], [0], [1], [0, 0, 1, 1], [], []>} : vector<32x400xf32>, vector<400x256xf32>, vector<32x256xf32> -> vector<32x256xf32>
    %c0_10 = arith.constant 0 : index
    %c0_11 = arith.constant 0 : index
    %93 = vector.load %arg5[%c0_10, %c0_11] : memref<32x1xf32, #tpu.memory_space<vmem>>, vector<32x1xf32>
    %94 = vector.broadcast %93 : vector<32x1xf32> to vector<32x256xf32>
    %95 = arith.addf %92, %94 : vector<32x256xf32>
    %96 = vector.extract_strided_slice %95 {offsets = [0, 1], sizes = [32, 255], strides = [1, 1]} : vector<32x256xf32> to vector<32x255xf32>
    %97 = vector.extract_strided_slice %95 {offsets = [0, 0], sizes = [32, 1], strides = [1, 1]} : vector<32x256xf32> to vector<32x1xf32>
    %98 = tpu.concatenate %96, %97 in 1 : vector<32x255xf32>, vector<32x1xf32> -> vector<32x256xf32>
    %99 = arith.maximumf %95, %98 : vector<32x256xf32>
    %100 = vector.extract_strided_slice %95 {offsets = [0, 16], sizes = [32, 240], strides = [1, 1]} : vector<32x256xf32> to vector<32x240xf32>
    %101 = vector.extract_strided_slice %95 {offsets = [0, 0], sizes = [32, 16], strides = [1, 1]} : vector<32x256xf32> to vector<32x16xf32>
    %102 = tpu.concatenate %100, %101 in 1 : vector<32x240xf32>, vector<32x16xf32> -> vector<32x256xf32>
    %103 = arith.maximumf %99, %102 : vector<32x256xf32>
    %104 = vector.extract_strided_slice %95 {offsets = [0, 17], sizes = [32, 239], strides = [1, 1]} : vector<32x256xf32> to vector<32x239xf32>
    %105 = vector.extract_strided_slice %95 {offsets = [0, 0], sizes = [32, 17], strides = [1, 1]} : vector<32x256xf32> to vector<32x17xf32>
    %106 = tpu.concatenate %104, %105 in 1 : vector<32x239xf32>, vector<32x17xf32> -> vector<32x256xf32>
    %107 = arith.maximumf %103, %106 : vector<32x256xf32>
    %cst_12 = arith.constant 0.000000e+00 : f32
    %108 = vector.broadcast %cst_12 : f32 to vector<32x256xf32>
    %109 = arith.maximumf %107, %108 : vector<32x256xf32>
    %110 = vector.extract_strided_slice %109 {offsets = [0, 2], sizes = [32, 254], strides = [1, 1]} : vector<32x256xf32> to vector<32x254xf32>
    %111 = vector.extract_strided_slice %109 {offsets = [0, 0], sizes = [32, 2], strides = [1, 1]} : vector<32x256xf32> to vector<32x2xf32>
    %112 = tpu.concatenate %110, %111 in 1 : vector<32x254xf32>, vector<32x2xf32> -> vector<32x256xf32>
    %113 = vector.extract_strided_slice %109 {offsets = [0, 4], sizes = [32, 252], strides = [1, 1]} : vector<32x256xf32> to vector<32x252xf32>
    %114 = vector.extract_strided_slice %109 {offsets = [0, 0], sizes = [32, 4], strides = [1, 1]} : vector<32x256xf32> to vector<32x4xf32>
    %115 = tpu.concatenate %113, %114 in 1 : vector<32x252xf32>, vector<32x4xf32> -> vector<32x256xf32>
    %116 = vector.extract_strided_slice %109 {offsets = [0, 6], sizes = [32, 250], strides = [1, 1]} : vector<32x256xf32> to vector<32x250xf32>
    %117 = vector.extract_strided_slice %109 {offsets = [0, 0], sizes = [32, 6], strides = [1, 1]} : vector<32x256xf32> to vector<32x6xf32>
    %118 = tpu.concatenate %116, %117 in 1 : vector<32x250xf32>, vector<32x6xf32> -> vector<32x256xf32>
    %119 = vector.extract_strided_slice %109 {offsets = [0, 32], sizes = [32, 224], strides = [1, 1]} : vector<32x256xf32> to vector<32x224xf32>
    %120 = vector.extract_strided_slice %109 {offsets = [0, 0], sizes = [32, 32], strides = [1, 1]} : vector<32x256xf32> to vector<32x32xf32>
    %121 = tpu.concatenate %119, %120 in 1 : vector<32x224xf32>, vector<32x32xf32> -> vector<32x256xf32>
    %122 = vector.extract_strided_slice %109 {offsets = [0, 34], sizes = [32, 222], strides = [1, 1]} : vector<32x256xf32> to vector<32x222xf32>
    %123 = vector.extract_strided_slice %109 {offsets = [0, 0], sizes = [32, 34], strides = [1, 1]} : vector<32x256xf32> to vector<32x34xf32>
    %124 = tpu.concatenate %122, %123 in 1 : vector<32x222xf32>, vector<32x34xf32> -> vector<32x256xf32>
    %125 = vector.extract_strided_slice %109 {offsets = [0, 36], sizes = [32, 220], strides = [1, 1]} : vector<32x256xf32> to vector<32x220xf32>
    %126 = vector.extract_strided_slice %109 {offsets = [0, 0], sizes = [32, 36], strides = [1, 1]} : vector<32x256xf32> to vector<32x36xf32>
    %127 = tpu.concatenate %125, %126 in 1 : vector<32x220xf32>, vector<32x36xf32> -> vector<32x256xf32>
    %128 = vector.extract_strided_slice %109 {offsets = [0, 38], sizes = [32, 218], strides = [1, 1]} : vector<32x256xf32> to vector<32x218xf32>
    %129 = vector.extract_strided_slice %109 {offsets = [0, 0], sizes = [32, 38], strides = [1, 1]} : vector<32x256xf32> to vector<32x38xf32>
    %130 = tpu.concatenate %128, %129 in 1 : vector<32x218xf32>, vector<32x38xf32> -> vector<32x256xf32>
    %131 = vector.extract_strided_slice %109 {offsets = [0, 64], sizes = [32, 192], strides = [1, 1]} : vector<32x256xf32> to vector<32x192xf32>
    %132 = vector.extract_strided_slice %109 {offsets = [0, 0], sizes = [32, 64], strides = [1, 1]} : vector<32x256xf32> to vector<32x64xf32>
    %133 = tpu.concatenate %131, %132 in 1 : vector<32x192xf32>, vector<32x64xf32> -> vector<32x256xf32>
    %134 = vector.extract_strided_slice %109 {offsets = [0, 66], sizes = [32, 190], strides = [1, 1]} : vector<32x256xf32> to vector<32x190xf32>
    %135 = vector.extract_strided_slice %109 {offsets = [0, 0], sizes = [32, 66], strides = [1, 1]} : vector<32x256xf32> to vector<32x66xf32>
    %136 = tpu.concatenate %134, %135 in 1 : vector<32x190xf32>, vector<32x66xf32> -> vector<32x256xf32>
    %137 = vector.extract_strided_slice %109 {offsets = [0, 68], sizes = [32, 188], strides = [1, 1]} : vector<32x256xf32> to vector<32x188xf32>
    %138 = vector.extract_strided_slice %109 {offsets = [0, 0], sizes = [32, 68], strides = [1, 1]} : vector<32x256xf32> to vector<32x68xf32>
    %139 = tpu.concatenate %137, %138 in 1 : vector<32x188xf32>, vector<32x68xf32> -> vector<32x256xf32>
    %140 = vector.extract_strided_slice %109 {offsets = [0, 70], sizes = [32, 186], strides = [1, 1]} : vector<32x256xf32> to vector<32x186xf32>
    %141 = vector.extract_strided_slice %109 {offsets = [0, 0], sizes = [32, 70], strides = [1, 1]} : vector<32x256xf32> to vector<32x70xf32>
    %142 = tpu.concatenate %140, %141 in 1 : vector<32x186xf32>, vector<32x70xf32> -> vector<32x256xf32>
    %143 = vector.extract_strided_slice %109 {offsets = [0, 96], sizes = [32, 160], strides = [1, 1]} : vector<32x256xf32> to vector<32x160xf32>
    %144 = vector.extract_strided_slice %109 {offsets = [0, 0], sizes = [32, 96], strides = [1, 1]} : vector<32x256xf32> to vector<32x96xf32>
    %145 = tpu.concatenate %143, %144 in 1 : vector<32x160xf32>, vector<32x96xf32> -> vector<32x256xf32>
    %146 = vector.extract_strided_slice %109 {offsets = [0, 98], sizes = [32, 158], strides = [1, 1]} : vector<32x256xf32> to vector<32x158xf32>
    %147 = vector.extract_strided_slice %109 {offsets = [0, 0], sizes = [32, 98], strides = [1, 1]} : vector<32x256xf32> to vector<32x98xf32>
    %148 = tpu.concatenate %146, %147 in 1 : vector<32x158xf32>, vector<32x98xf32> -> vector<32x256xf32>
    %149 = vector.extract_strided_slice %109 {offsets = [0, 100], sizes = [32, 156], strides = [1, 1]} : vector<32x256xf32> to vector<32x156xf32>
    %150 = vector.extract_strided_slice %109 {offsets = [0, 0], sizes = [32, 100], strides = [1, 1]} : vector<32x256xf32> to vector<32x100xf32>
    %151 = tpu.concatenate %149, %150 in 1 : vector<32x156xf32>, vector<32x100xf32> -> vector<32x256xf32>
    %152 = vector.extract_strided_slice %109 {offsets = [0, 102], sizes = [32, 154], strides = [1, 1]} : vector<32x256xf32> to vector<32x154xf32>
    %153 = vector.extract_strided_slice %109 {offsets = [0, 0], sizes = [32, 102], strides = [1, 1]} : vector<32x256xf32> to vector<32x102xf32>
    %154 = tpu.concatenate %152, %153 in 1 : vector<32x154xf32>, vector<32x102xf32> -> vector<32x256xf32>
    %155 = tpu.concatenate %109, %112, %115, %118, %121, %124, %127, %130, %133, %136, %139, %142, %145, %148, %151, %154 in 0 : vector<32x256xf32>, vector<32x256xf32>, vector<32x256xf32>, vector<32x256xf32>, vector<32x256xf32>, vector<32x256xf32>, vector<32x256xf32>, vector<32x256xf32>, vector<32x256xf32>, vector<32x256xf32>, vector<32x256xf32>, vector<32x256xf32>, vector<32x256xf32>, vector<32x256xf32>, vector<32x256xf32>, vector<32x256xf32> -> vector<512x256xf32>
    %c0_13 = arith.constant 0 : index
    %c0_14 = arith.constant 0 : index
    %156 = vector.load %arg6[%c0_13, %c0_14] : memref<50x512xf32, #tpu.memory_space<vmem>>, vector<50x512xf32>
    %cst_15 = arith.constant dense<0.000000e+00> : vector<50x256xf32>
    %157 = tpu.matmul %156, %155, %cst_15 {dimension_numbers = #tpu.dot_dimension_numbers<[1], [0], [0], [1], [0, 0, 1, 1], [], []>} : vector<50x512xf32>, vector<512x256xf32>, vector<50x256xf32> -> vector<50x256xf32>
    %c0_16 = arith.constant 0 : index
    %c0_17 = arith.constant 0 : index
    %158 = vector.load %arg7[%c0_16, %c0_17] : memref<50x1xf32, #tpu.memory_space<vmem>>, vector<50x1xf32>
    %159 = vector.broadcast %158 : vector<50x1xf32> to vector<50x256xf32>
    %160 = arith.addf %157, %159 : vector<50x256xf32>
    %cst_18 = arith.constant 0.000000e+00 : f32
    %161 = vector.broadcast %cst_18 : f32 to vector<50x256xf32>
    %162 = arith.maximumf %160, %161 : vector<50x256xf32>
    %c0_19 = arith.constant 0 : index
    %c0_20 = arith.constant 0 : index
    %163 = vector.load %arg8[%c0_19, %c0_20] : memref<10x50xf32, #tpu.memory_space<vmem>>, vector<10x50xf32>
    %cst_21 = arith.constant dense<0.000000e+00> : vector<10x256xf32>
    %164 = tpu.matmul %163, %162, %cst_21 {dimension_numbers = #tpu.dot_dimension_numbers<[1], [0], [0], [1], [0, 0, 1, 1], [], []>} : vector<10x50xf32>, vector<50x256xf32>, vector<10x256xf32> -> vector<10x256xf32>
    %c0_22 = arith.constant 0 : index
    %c0_23 = arith.constant 0 : index
    %165 = vector.load %arg9[%c0_22, %c0_23] : memref<10x1xf32, #tpu.memory_space<vmem>>, vector<10x1xf32>
    %166 = vector.broadcast %165 : vector<10x1xf32> to vector<10x256xf32>
    %167 = arith.addf %164, %166 : vector<10x256xf32>
    %cst_24 = arith.constant dense<0xFF800000> : vector<256xf32>
    %168 = vector.multi_reduction <maximumf>, %167, %cst_24 [0] : vector<10x256xf32> to vector<256xf32>
    %169 = vector.shape_cast %168 : vector<256xf32> to vector<1x256xf32>
    %170 = vector.broadcast %169 : vector<1x256xf32> to vector<10x256xf32>
    %171 = arith.subf %167, %170 : vector<10x256xf32>
    %172 = math.exp %171 : vector<10x256xf32>
    %cst_25 = arith.constant dense<0.000000e+00> : vector<256xf32>
    %173 = vector.multi_reduction <add>, %172, %cst_25 [0] : vector<10x256xf32> to vector<256xf32>
    %174 = vector.shape_cast %173 : vector<256xf32> to vector<1x256xf32>
    %175 = math.log %174 : vector<1x256xf32>
    %176 = vector.broadcast %175 : vector<1x256xf32> to vector<10x256xf32>
    %177 = arith.subf %171, %176 : vector<10x256xf32>
    %c0_26 = arith.constant 0 : index
    %c0_27 = arith.constant 0 : index
    %c0_28 = arith.constant 0 : index
    %178 = vector.load %arg10[%c0_26, %c0_27, %c0_28] : memref<1x10x256xf32, #tpu.memory_space<vmem>>, vector<1x10x256xf32>
    %179 = vector.shape_cast %178 : vector<1x10x256xf32> to vector<10x256xf32>
    %180 = vector.shape_cast %177 : vector<10x256xf32> to vector<1x10x256xf32>
    tpu.vector_store %arg10[%c0_26, %c0_27, %c0_28], %180 {strides = array<i32>} : memref<1x10x256xf32, #tpu.memory_space<vmem>>, vector<1x10x256xf32>,
    return
  }
  func.func @transform_0(%arg0: i32) -> (i32, i32, i32) {
    %c0_i32 = arith.constant 0 : i32
    %c0_i32_0 = arith.constant 0 : i32
    %c0_i32_1 = arith.constant 0 : i32
    return %arg0, %c0_i32, %c0_i32_0 : i32, i32, i32
  }
  func.func @transform_1(%arg0: i32) -> (i32, i32) {
    %c0_i32 = arith.constant 0 : i32
    %c0_i32_0 = arith.constant 0 : i32
    %c0_i32_1 = arith.constant 0 : i32
    return %c0_i32, %c0_i32_0 : i32, i32
  }
  func.func @transform_2(%arg0: i32) -> (i32, i32) {
    %c0_i32 = arith.constant 0 : i32
    %c0_i32_0 = arith.constant 0 : i32
    %c0_i32_1 = arith.constant 0 : i32
    return %c0_i32, %c0_i32_0 : i32, i32
  }
  func.func @transform_3(%arg0: i32) -> (i32, i32) {
    %c0_i32 = arith.constant 0 : i32
    %c0_i32_0 = arith.constant 0 : i32
    %c0_i32_1 = arith.constant 0 : i32
    return %c0_i32, %c0_i32_0 : i32, i32
  }
  func.func @transform_4(%arg0: i32) -> (i32, i32) {
    %c0_i32 = arith.constant 0 : i32
    %c0_i32_0 = arith.constant 0 : i32
    %c0_i32_1 = arith.constant 0 : i32
    return %c0_i32, %c0_i32_0 : i32, i32
  }
  func.func @transform_5(%arg0: i32) -> (i32, i32) {
    %c0_i32 = arith.constant 0 : i32
    %c0_i32_0 = arith.constant 0 : i32
    %c0_i32_1 = arith.constant 0 : i32
    return %c0_i32, %c0_i32_0 : i32, i32
  }
  func.func @transform_6(%arg0: i32) -> (i32, i32) {
    %c0_i32 = arith.constant 0 : i32
    %c0_i32_0 = arith.constant 0 : i32
    %c0_i32_1 = arith.constant 0 : i32
    return %c0_i32, %c0_i32_0 : i32, i32
  }
  func.func @transform_7(%arg0: i32) -> (i32, i32) {
    %c0_i32 = arith.constant 0 : i32
    %c0_i32_0 = arith.constant 0 : i32
    %c0_i32_1 = arith.constant 0 : i32
    return %c0_i32, %c0_i32_0 : i32, i32
  }
  func.func @transform_8(%arg0: i32) -> (i32, i32) {
    %c0_i32 = arith.constant 0 : i32
    %c0_i32_0 = arith.constant 0 : i32
    %c0_i32_1 = arith.constant 0 : i32
    return %c0_i32, %c0_i32_0 : i32, i32
  }
  func.func @transform_9(%arg0: i32) -> (i32, i32, i32) {
    %c0_i32 = arith.constant 0 : i32
    %c0_i32_0 = arith.constant 0 : i32
    %c0_i32_1 = arith.constant 0 : i32
    return %arg0, %c0_i32, %c0_i32_0 : i32, i32, i32
  }
}

</mosaic_0001>

<llo_original>
// kernel: mnist_forward.1
$region0: #{mnist_forward.1}
  #allocation0 [shape = 'u32[]', space=smem, size = 0x4, offset = 0x4, fixed_abs, tag = 'smem constant byte address 0x4 - core index']
  #allocation1 [shape = 'u32[144,128]{1,0:T(1,128)}', space=vmem, size = 0x12000, scoped, tag = 'internal scratch']
  %s0 = inlined_call_operand.vmem [shape: f32[2,25,1024], index: 0, kind: input, shape index: {}]
  %s1 = inlined_call_operand.vmem [shape: f32[16,25], index: 1, kind: input, shape index: {}]
  %s2 = inlined_call_operand.vmem [shape: f32[16,1], index: 2, kind: input, shape index: {}]
  %s3 = inlined_call_operand.vmem [shape: f32[32,400], index: 3, kind: input, shape index: {}]
  %s4 = inlined_call_operand.vmem [shape: f32[32,1], index: 4, kind: input, shape index: {}]
  %s5 = inlined_call_operand.vmem [shape: f32[50,512], index: 5, kind: input, shape index: {}]
  %s6 = inlined_call_operand.vmem [shape: f32[50,1], index: 6, kind: input, shape index: {}]
  %s7 = inlined_call_operand.vmem [shape: f32[10,50], index: 7, kind: input, shape index: {}]
  %s8 = inlined_call_operand.vmem [shape: f32[10,1], index: 8, kind: input, shape index: {}]
  %s9 = inlined_call_operand.vmem [shape: f32[2,10,256], index: 9, kind: output, shape index: {}]
  %s10 = sld [smem:[#allocation0]]
  $region69: #{mnist_forward.1} parent=0
    _
  %s12 = ssub.s32 1, %s10
  %s13 = scalar_select 0, %s12, %s10
  loop: start=0, step=1, limit=4
  $region2: #{mnist_forward.1} parent=0 // loop_pre_header
    _
  $region3: #{mnist_forward.1} parent=0 // loop_header
    %s15 = sphi 0, %s19
    %p16 = scmp.ge.s32.totalorder %s15, 4
    %s25 = sphi 0, %s27
    %s28 = sphi 0, %s25
    %s29 = sphi 0, %s28
    %s45 = sphi 0, %s29
    %s49 = sphi 0, %s49
    %s51 = sphi 0, %s49
    %s52 = sphi 0, %s51
    %s66 = sphi 0, %s52
    %s70 = sphi 0, %s70
    %s72 = sphi 0, %s70
    %s73 = sphi 0, %s72
    %s87 = sphi 0, %s73
    %s91 = sphi 0, %s91
    %s93 = sphi 0, %s91
    %s94 = sphi 0, %s93
    %s108 = sphi 0, %s94
    %s112 = sphi 0, %s112
    %s114 = sphi 0, %s112
    %s115 = sphi 0, %s114
    %s129 = sphi 0, %s115
    %s133 = sphi 0, %s133
    %s135 = sphi 0, %s133
    %s136 = sphi 0, %s135
    %s150 = sphi 0, %s136
    %s154 = sphi 0, %s154
    %s156 = sphi 0, %s154
    %s157 = sphi 0, %s156
    %s171 = sphi 0, %s157
    %s175 = sphi 0, %s175
    %s177 = sphi 0, %s175
    %s178 = sphi 0, %s177
    %s192 = sphi 0, %s178
    %s196 = sphi 0, %s196
    %s198 = sphi 0, %s196
    %s199 = sphi 0, %s198
    %s213 = sphi 0, %s199
    %s219 = sphi 0, %s221
    %s222 = sphi 0, %s219
    %s223 = sphi 0, %s222
    %s239 = sphi 0, %s223
  $region4: #{mnist_forward.1} parent=0 // loop_header_branch
    %18 = sbr.rel (%p16) target = $region8
  $region5: #{mnist_forward.1} parent=0 // loop_body
    %s20 = ssub.s32 %s15, 1
    %s21 = ssub.s32 %s15, 2
    %s22 = sadd.s32 %s15, 1
    %s23 = ssub.s32 %s15, %s22
    %p24 = scmp.eq.s32.totalorder %s23, 0
    %s26 = sadd.s32 %s25, 1
    %s27 = scalar_select %p24, %s25, %s26
    %p30 = pneg %p24
    %p31 = scmp.eq.s32.totalorder %s15, 1
    %p32 = por %p30, %p31
    %p33 = scmp.ne.s32.totalorder %s25, %s28
    %p34 = scmp.eq.s32.totalorder %s15, 0
    %p35 = por %p33, %p34
    %p36 = scmp.ne.s32.totalorder %s25, %s28
    %p37 = scmp.eq.s32.totalorder %s20, 1
    %p38 = por %p36, %p37
    %p39 = scmp.ne.s32.totalorder %s28, %s29
    %p40 = scmp.eq.s32.totalorder %s20, 0
    %p41 = por %p39, %p40
    %p42 = scmp.ne.s32.totalorder %s28, %s29
    %p43 = scmp.eq.s32.totalorder %s21, 1
    %p44 = por %p42, %p43
    %p46 = scmp.ne.s32.totalorder %s29, %s45
    %p47 = scmp.eq.s32.totalorder %s21, 0
    %p48 = por %p46, %p47
    %s50 = sadd.s32 %s49, 1
    %p53 = scmp.eq.s32.totalorder %s15, 1
    %p54 = scmp.ne.s32.totalorder %s49, %s51
    %p55 = scmp.eq.s32.totalorder %s15, 0
    %p56 = por %p54, %p55
    %p57 = scmp.ne.s32.totalorder %s49, %s51
    %p58 = scmp.eq.s32.totalorder %s20, 1
    %p59 = por %p57, %p58
    %p60 = scmp.ne.s32.totalorder %s51, %s52
    %p61 = scmp.eq.s32.totalorder %s20, 0
    %p62 = por %p60, %p61
    %p63 = scmp.ne.s32.totalorder %s51, %s52
    %p64 = scmp.eq.s32.totalorder %s21, 1
    %p65 = por %p63, %p64
    %p67 = scmp.ne.s32.totalorder %s52, %s66
    %p68 = scmp.eq.s32.totalorder %s21, 0
    %p69 = por %p67, %p68
    %s71 = sadd.s32 %s70, 1
    %p74 = scmp.eq.s32.totalorder %s15, 1
    %p75 = scmp.ne.s32.totalorder %s70, %s72
    %p76 = scmp.eq.s32.totalorder %s15, 0
    %p77 = por %p75, %p76
    %p78 = scmp.ne.s32.totalorder %s70, %s72
    %p79 = scmp.eq.s32.totalorder %s20, 1
    %p80 = por %p78, %p79
    %p81 = scmp.ne.s32.totalorder %s72, %s73
    %p82 = scmp.eq.s32.totalorder %s20, 0
    %p83 = por %p81, %p82
    %p84 = scmp.ne.s32.totalorder %s72, %s73
    %p85 = scmp.eq.s32.totalorder %s21, 1
    %p86 = por %p84, %p85
    %p88 = scmp.ne.s32.totalorder %s73, %s87
    %p89 = scmp.eq.s32.totalorder %s21, 0
    %p90 = por %p88, %p89
    %s92 = sadd.s32 %s91, 1
    %p95 = scmp.eq.s32.totalorder %s15, 1
    %p96 = scmp.ne.s32.totalorder %s91, %s93
    %p97 = scmp.eq.s32.totalorder %s15, 0
    %p98 = por %p96, %p97
    %p99 = scmp.ne.s32.totalorder %s91, %s93
    %p100 = scmp.eq.s32.totalorder %s20, 1
    %p101 = por %p99, %p100
    %p102 = scmp.ne.s32.totalorder %s93, %s94
    %p103 = scmp.eq.s32.totalorder %s20, 0
    %p104 = por %p102, %p103
    %p105 = scmp.ne.s32.totalorder %s93, %s94
    %p106 = scmp.eq.s32.totalorder %s21, 1
    %p107 = por %p105, %p106
    %p109 = scmp.ne.s32.totalorder %s94, %s108
    %p110 = scmp.eq.s32.totalorder %s21, 0
    %p111 = por %p109, %p110
    %s113 = sadd.s32 %s112, 1
    %p116 = scmp.eq.s32.totalorder %s15, 1
    %p117 = scmp.ne.s32.totalorder %s112, %s114
    %p118 = scmp.eq.s32.totalorder %s15, 0
    %p119 = por %p117, %p118
    %p120 = scmp.ne.s32.totalorder %s112, %s114
    %p121 = scmp.eq.s32.totalorder %s20, 1
    %p122 = por %p120, %p121
    %p123 = scmp.ne.s32.totalorder %s114, %s115
    %p124 = scmp.eq.s32.totalorder %s20, 0
    %p125 = por %p123, %p124
    %p126 = scmp.ne.s32.totalorder %s114, %s115
    %p127 = scmp.eq.s32.totalorder %s21, 1
    %p128 = por %p126, %p127
    %p130 = scmp.ne.s32.totalorder %s115, %s129
    %p131 = scmp.eq.s32.totalorder %s21, 0
    %p132 = por %p130, %p131
    %s134 = sadd.s32 %s133, 1
    %p137 = scmp.eq.s32.totalorder %s15, 1
    %p138 = scmp.ne.s32.totalorder %s133, %s135
    %p139 = scmp.eq.s32.totalorder %s15, 0
    %p140 = por %p138, %p139
    %p141 = scmp.ne.s32.totalorder %s133, %s135
    %p142 = scmp.eq.s32.totalorder %s20, 1
    %p143 = por %p141, %p142
    %p144 = scmp.ne.s32.totalorder %s135, %s136
    %p145 = scmp.eq.s32.totalorder %s20, 0
    %p146 = por %p144, %p145
    %p147 = scmp.ne.s32.totalorder %s135, %s136
    %p148 = scmp.eq.s32.totalorder %s21, 1
    %p149 = por %p147, %p148
    %p151 = scmp.ne.s32.totalorder %s136, %s150
    %p152 = scmp.eq.s32.totalorder %s21, 0
    %p153 = por %p151, %p152
    %s155 = sadd.s32 %s154, 1
    %p158 = scmp.eq.s32.totalorder %s15, 1
    %p159 = scmp.ne.s32.totalorder %s154, %s156
    %p160 = scmp.eq.s32.totalorder %s15, 0
    %p161 = por %p159, %p160
    %p162 = scmp.ne.s32.totalorder %s154, %s156
    %p163 = scmp.eq.s32.totalorder %s20, 1
    %p164 = por %p162, %p163
    %p165 = scmp.ne.s32.totalorder %s156, %s157
    %p166 = scmp.eq.s32.totalorder %s20, 0
    %p167 = por %p165, %p166
    %p168 = scmp.ne.s32.totalorder %s156, %s157
    %p169 = scmp.eq.s32.totalorder %s21, 1
    %p170 = por %p168, %p169
    %p172 = scmp.ne.s32.totalorder %s157, %s171
    %p173 = scmp.eq.s32.totalorder %s21, 0
    %p174 = por %p172, %p173
    %s176 = sadd.s32 %s175, 1
    %p179 = scmp.eq.s32.totalorder %s15, 1
    %p180 = scmp.ne.s32.totalorder %s175, %s177
    %p181 = scmp.eq.s32.totalorder %s15, 0
    %p182 = por %p180, %p181
    %p183 = scmp.ne.s32.totalorder %s175, %s177
    %p184 = scmp.eq.s32.totalorder %s20, 1
    %p185 = por %p183, %p184
    %p186 = scmp.ne.s32.totalorder %s177, %s178
    %p187 = scmp.eq.s32.totalorder %s20, 0
    %p188 = por %p186, %p187
    %p189 = scmp.ne.s32.totalorder %s177, %s178
    %p190 = scmp.eq.s32.totalorder %s21, 1
    %p191 = por %p189, %p190
    %p193 = scmp.ne.s32.totalorder %s178, %s192
    %p194 = scmp.eq.s32.totalorder %s21, 0
    %p195 = por %p193, %p194
    %s197 = sadd.s32 %s196, 1
    %p200 = scmp.eq.s32.totalorder %s15, 1
    %p201 = scmp.ne.s32.totalorder %s196, %s198
    %p202 = scmp.eq.s32.totalorder %s15, 0
    %p203 = por %p201, %p202
    %p204 = scmp.ne.s32.totalorder %s196, %s198
    %p205 = scmp.eq.s32.totalorder %s20, 1
    %p206 = por %p204, %p205
    %p207 = scmp.ne.s32.totalorder %s198, %s199
    %p208 = scmp.eq.s32.totalorder %s20, 0
    %p209 = por %p207, %p208
    %p210 = scmp.ne.s32.totalorder %s198, %s199
    %p211 = scmp.eq.s32.totalorder %s21, 1
    %p212 = por %p210, %p211
    %p214 = scmp.ne.s32.totalorder %s199, %s213
    %p215 = scmp.eq.s32.totalorder %s21, 0
    %p216 = por %p214, %p215
    %s217 = ssub.s32 %s15, %s22
    %p218 = scmp.eq.s32.totalorder %s217, 0
    %s220 = sadd.s32 %s219, 1
    %s221 = scalar_select %p218, %s219, %s220
    %p224 = pneg %p218
    %p225 = scmp.eq.s32.totalorder %s15, 1
    %p226 = por %p224, %p225
    %p227 = scmp.ne.s32.totalorder %s219, %s222
    %p228 = scmp.eq.s32.totalorder %s15, 0
    %p229 = por %p227, %p228
    %p230 = scmp.ne.s32.totalorder %s219, %s222
    %p231 = scmp.eq.s32.totalorder %s20, 1
    %p232 = por %p230, %p231
    %p233 = scmp.ne.s32.totalorder %s222, %s223
    %p234 = scmp.eq.s32.totalorder %s20, 0
    %p235 = por %p233, %p234
    %p236 = scmp.ne.s32.totalorder %s222, %s223
    %p237 = scmp.eq.s32.totalorder %s21, 1
    %p238 = por %p236, %p237
    %p240 = scmp.ne.s32.totalorder %s223, %s239
    %p241 = scmp.eq.s32.totalorder %s21, 0
    %p242 = por %p240, %p241
    %p243 = scmp.le.s32.totalorder 1, %s15
    %p244 = scmp.lt.s32.totalorder %s15, 3
    %p245 = pnand %p243, %p244
    %p246 = pneg %p245
    // Predicated region
    $region9: #{mnist_forward.1} parent=5 // pred_check
      _
    $region10: #{mnist_forward.1} parent=5 // pred_check_branch
      %248 = sbr.rel (%p245) target = $region12
    $region11: #{mnist_forward.1} parent=5 // pred_region
      %s249 = ssub.s32 %s15, 1
      // Predicated region
      $region13: #{mnist_forward.1} parent=11 // pred_check
        %p250 = pneg %p62
      $region14: #{mnist_forward.1} parent=11 // pred_check_branch
        %252 = sbr.rel (%p250) target = $region16
      $region15: #{mnist_forward.1} parent=11 // pred_region
        _
      $region16: #{mnist_forward.1} parent=11 // pred_fallthru
        _
      // Predicated region
      $region17: #{mnist_forward.1} parent=11 // pred_check
        %p253 = pneg %p83
      $region18: #{mnist_forward.1} parent=11 // pred_check_branch
        %255 = sbr.rel (%p253) target = $region20
      $region19: #{mnist_forward.1} parent=11 // pred_region
        _
      $region20: #{mnist_forward.1} parent=11 // pred_fallthru
        _
      // Predicated region
      $region21: #{mnist_forward.1} parent=11 // pred_check
        %p256 = pneg %p104
      $region22: #{mnist_forward.1} parent=11 // pred_check_branch
        %258 = sbr.rel (%p256) target = $region24
      $region23: #{mnist_forward.1} parent=11 // pred_region
        _
      $region24: #{mnist_forward.1} parent=11 // pred_fallthru
        _
      // Predicated region
      $region25: #{mnist_forward.1} parent=11 // pred_check
        %p259 = pneg %p125
      $region26: #{mnist_forward.1} parent=11 // pred_check_branch
        %261 = sbr.rel (%p259) target = $region28
      $region27: #{mnist_forward.1} parent=11 // pred_region
        _
      $region28: #{mnist_forward.1} parent=11 // pred_fallthru
        _
      // Predicated region
      $region29: #{mnist_forward.1} parent=11 // pred_check
        %p262 = pneg %p146
      $region30: #{mnist_forward.1} parent=11 // pred_check_branch
        %264 = sbr.rel (%p262) target = $region32
      $region31: #{mnist_forward.1} parent=11 // pred_region
        _
      $region32: #{mnist_forward.1} parent=11 // pred_fallthru
        _
      // Predicated region
      $region33: #{mnist_forward.1} parent=11 // pred_check
        %p265 = pneg %p167
      $region34: #{mnist_forward.1} parent=11 // pred_check_branch
        %267 = sbr.rel (%p265) target = $region36
      $region35: #{mnist_forward.1} parent=11 // pred_region
        _
      $region36: #{mnist_forward.1} parent=11 // pred_fallthru
        _
      // Predicated region
      $region37: #{mnist_forward.1} parent=11 // pred_check
        %p268 = pneg %p188
      $region38: #{mnist_forward.1} parent=11 // pred_check_branch
        %270 = sbr.rel (%p268) target = $region40
      $region39: #{mnist_forward.1} parent=11 // pred_region
        _
      $region40: #{mnist_forward.1} parent=11 // pred_fallthru
        _
      // Predicated region
      $region41: #{mnist_forward.1} parent=11 // pred_check
        %p271 = pneg %p209
      $region42: #{mnist_forward.1} parent=11 // pred_check_branch
        %273 = sbr.rel (%p271) target = $region44
      $region43: #{mnist_forward.1} parent=11 // pred_region
        _
      $region44: #{mnist_forward.1} parent=11 // pred_fallthru
        _
    $region12: #{mnist_forward.1} parent=5 // pred_fallthru
      _
    %p274 = scmp.lt.s32.totalorder %s15, 2
    // Predicated region
    $region45: #{mnist_forward.1} parent=5 // pred_check
      %p275 = pneg %p274
    $region46: #{mnist_forward.1} parent=5 // pred_check_branch
      %277 = sbr.rel (%p275) target = $region48
    $region47: #{mnist_forward.1} parent=5 // pred_region
      // Predicated region
      $region49: #{mnist_forward.1} parent=47 // pred_check
        %p278 = pneg %p35
      $region50: #{mnist_forward.1} parent=47 // pred_check_branch
        %280 = sbr.rel (%p278) target = $region52
      $region51: #{mnist_forward.1} parent=47 // pred_region
        %p281 = scmp.lt.s32.totalorder %s15, 1
        %s282 = scalar_select %p281, %s15, 1
        %s283 = smul.addr %s282, 32
        %s284 = smul.addr %s283, 8
        %s285 = scalar_lea.vmem %s0, %s284
      $region52: #{mnist_forward.1} parent=47 // pred_fallthru
        _
    $region48: #{mnist_forward.1} parent=5 // pred_fallthru
      _
    %p286 = scmp.le.s32.totalorder 1, %s15
    %p287 = scmp.lt.s32.totalorder %s15, 3
    %p288 = pnand %p286, %p287
    %p289 = pneg %p288
    // Predicated region
    $region53: #{mnist_forward.1} parent=5 // pred_check
      _
    $region54: #{mnist_forward.1} parent=5 // pred_check_branch
      %291 = sbr.rel (%p288) target = $region56
    $region55: #{mnist_forward.1} parent=5 // pred_region
      %s292 = ssub.s32 %s15, 1
      %p293 = scmp.lt.s32.totalorder %s20, 1
      %s294 = scalar_select %p293, %s20, 1
      %s295 = smul.addr %s294, 32
      %s296 = smul.addr %s295, 8
      %s297 = scalar_lea.vmem %s0, %s296
      %p298 = pneg %p41
      %p299 = pneg %p38
      %p300 = pneg %p62
      %p301 = pneg %p59
      %p302 = pneg %p83
      %p303 = pneg %p80
      %p304 = pneg %p104
      %p305 = pneg %p101
      %p306 = pneg %p125
      %p307 = pneg %p122
      %p308 = pneg %p146
      %p309 = pneg %p143
      %p310 = pneg %p167
      %p311 = pneg %p164
      %p312 = pneg %p188
      %p313 = pneg %p185
      %p314 = pneg %p209
      %p315 = pneg %p206
      %p316 = pneg %p235
      %p317 = pneg %p232
      %p318 = scmp.lt.s32.totalorder %s20, 1
      %s319 = scalar_select %p318, %s20, 1
      %s320 = smul.addr %s319, 4
      %s321 = smul.addr %s320, 8
      %s322 = scalar_lea.vmem %s9, %s321
      %p323 = scmp.lt.s32.totalorder %s20, 1
      %s324 = scalar_select %p323, %s20, 1
      %s325 = smul.addr %s324, 32
      %s326 = smul.addr %s325, 8
      %s327 = scalar_lea.vmem %s0, %s326
      %p328 = scmp.lt.s32.totalorder %s20, 1
      %s329 = scalar_select %p328, %s20, 1
      %s330 = smul.addr %s329, 4
      %s331 = smul.addr %s330, 8
      %s332 = scalar_lea.vmem %s9, %s331
      %v333 = vld [vmem:[%s1] sm:$0xff]
      %v334 = vld [vmem:[%s1 + $0x8] sm:$0xff]
      %v335 = vld [vmem:[%s327] sm:$0xff]
      %v336 = vld [vmem:[%s327 + $0x8] sm:$0xff]
      %v337 = vld [vmem:[%s327 + $0x10] sm:$0xff]
      %v338 = vld [vmem:[%s327 + $0x18] sm:$0xff]
      %v339 = vld [vmem:[%s327 + $0x20] sm:$0xff]
      %v340 = vld [vmem:[%s327 + $0x28] sm:$0xff]
      %v341 = vld [vmem:[%s327 + $0x30] sm:$0xff]
      %v342 = vld [vmem:[%s327 + $0x38] sm:$0xff]
      %v343 = vld [vmem:[%s327 + $0x40] sm:$0xff]
      %v344 = vld [vmem:[%s327 + $0x48] sm:$0xff]
      %v345 = vld [vmem:[%s327 + $0x50] sm:$0xff]
      %v346 = vld [vmem:[%s327 + $0x58] sm:$0xff]
      %v347 = vld [vmem:[%s327 + $0x60] sm:$0xff]
      %v348 = vld [vmem:[%s327 + $0x68] sm:$0xff]
      %v349 = vld [vmem:[%s327 + $0x70] sm:$0xff]
      %v350 = vld [vmem:[%s327 + $0x78] sm:$0xff]
      %v351 = vld [vmem:[%s327 + $0x80] sm:$0xff]
      %v352 = vld [vmem:[%s327 + $0x88] sm:$0xff]
      %v353 = vld [vmem:[%s327 + $0x90] sm:$0xff]
      %v354 = vld [vmem:[%s327 + $0x98] sm:$0xff]
      %v355 = vld [vmem:[%s327 + $0xa0] sm:$0xff]
      %v356 = vld [vmem:[%s327 + $0xa8] sm:$0xff]
      %v357 = vld [vmem:[%s327 + $0xb0] sm:$0xff]
      %v358 = vld [vmem:[%s327 + $0xb8] sm:$0xff]
      %v359 = vld [vmem:[%s327 + $0xc0] sm:$0x1]
      %v360 = vld [vmem:[%s327 + $0xc8] sm:$0x1]
      %v361 = vld [vmem:[%s327 + $0xd0] sm:$0x1]
      %v362 = vld [vmem:[%s327 + $0xd8] sm:$0x1]
      %v363 = vld [vmem:[%s327 + $0xe0] sm:$0x1]
      %v364 = vld [vmem:[%s327 + $0xe8] sm:$0x1]
      %v365 = vld [vmem:[%s327 + $0xf0] sm:$0x1]
      %v366 = vld [vmem:[%s327 + $0xf8] sm:$0x1]
      %vm367 = vcmask 203776
      %v369 = vsel %vm367, %v333, 0
      %v372 = vsel %vm367, %v334, 0
      %vm374 = vcmask 1040384
      %v376 = vsel %vm374, %v359, 0
      %v379 = vsel %vm374, %v360, 0
      %v382 = vsel %vm374, %v361, 0
      %v385 = vsel %vm374, %v362, 0
      %v388 = vsel %vm374, %v363, 0
      %v391 = vsel %vm374, %v364, 0
      %v394 = vsel %vm374, %v365, 0
      %v397 = vsel %vm374, %v366, 0
      %399 = vmatprep.subr.mxu0 %v336
      %400 = vmatpush1.msra.mxu0 %v335
      %401 = vmatprep.subr.mxu0 %v344
      %402 = vmatpush1.msra.mxu0 %v343
      %403 = vmatprep.subr.mxu0 %v352
      %404 = vmatpush1.msra.mxu0 %v351
      %405 = vmatprep.subr.mxu0 %v379
      %406 = vmatpush1.msra.mxu0 %v376
      %407 = vmatprep.subr.mxu0 0.0
      %408 = vmatpush1.msra.mxu0 0.0
      %409 = vmatprep.subr.mxu0 0.0
      %410 = vmatpush1.msra.mxu0 0.0
      %411 = vmatprep.subr.mxu0 0.0
      %412 = vmatpush1.msra.mxu0 0.0
      %413 = vmatprep.subr.mxu0 0.0
      %414 = vmatpush1.msra.mxu0 0.0
      %415 = vmatprep.subr.mxu0 0.0
      %416 = vmatpush1.msra.mxu0 0.0
      %417 = vmatprep.subr.mxu0 0.0
      %418 = vmatpush1.msra.mxu0 0.0
      %419 = vmatprep.subr.mxu0 0.0
      %420 = vmatpush1.msra.mxu0 0.0
      %421 = vmatprep.subr.mxu0 0.0
      %422 = vmatpush1.msra.mxu0 0.0
      %423 = vmatprep.subr.mxu0 0.0
      %424 = vmatpush1.msra.mxu0 0.0
      %425 = vmatprep.subr.mxu0 0.0
      %426 = vmatpush1.msra.mxu0 0.0
      %427 = vmatprep.subr.mxu0 0.0
      %428 = vmatpush1.msra.mxu0 0.0
      %429 = vmatprep.subr.mxu0 0.0
      %430 = vmatpush1.msra.mxu0 0.0
      %431 = vmatprep.subr.mxu0 0.0
      %432 = vmatpush1.msra.mxu0 0.0
      %433 = vmatprep.subr.mxu0 0.0
      %434 = vmatpush1.msra.mxu0 0.0
      %435 = vmatprep.subr.mxu0 0.0
      %436 = vmatpush1.msra.mxu0 0.0
      %437 = vmatprep.subr.mxu0 0.0
      %438 = vmatpush1.msra.mxu0 0.0
      %439 = vmatprep.subr.mxu0 0.0
      %440 = vmatpush1.msra.mxu0 0.0
      %441 = vmatprep.subr.mxu0 0.0
      %442 = vmatpush1.msra.mxu0 0.0
      %443 = vmatprep.subr.mxu0 0.0
      %444 = vmatpush1.msra.mxu0 0.0
      %445 = vmatprep.subr.mxu0 0.0
      %446 = vmatpush1.msra.mxu0 0.0
      %447 = vmatprep.subr.mxu0 0.0
      %448 = vmatpush1.msra.mxu0 0.0
      %449 = vmatprep.subr.mxu0 0.0
      %450 = vmatpush1.msra.mxu0 0.0
      %451 = vmatprep.subr.mxu0 0.0
      %452 = vmatpush1.msra.mxu0 0.0
      %453 = vmatprep.subr.mxu0 0.0
      %454 = vmatpush1.msra.mxu0 0.0
      %455 = vmatprep.subr.mxu0 0.0
      %456 = vmatpush1.msra.mxu0 0.0
      %457 = vmatprep.subr.mxu0 0.0
      %458 = vmatpush1.msra.mxu0 0.0
      %459 = vmatprep.subr.mxu0 0.0
      %460 = vmatpush1.msra.mxu0 0.0
      %461 = vmatprep.subr.mxu0 0.0
      %462 = vmatpush1.msra.mxu0 0.0
      %463 = vmatprep.mubr.f32.mxu0 0.0
      %464 = vmatmul.mubr.f32.gmra.mrb[0].mxu0 %v369
      %v465 = vpop.f32.mrb[0].mxu0
      %v466 = vadd.f32 0.0, %v465
      %v467 = vpop.f32.mrb[0].mxu0
      %v468 = vadd.f32 0.0, %v467
      %469 = vmatprep.mubr.f32.mxu0 0.0
      %470 = vmatmul.mubr.f32.gmra.mrb[0].mxu0 %v372
      %v471 = vpop.f32.mrb[0].mxu0
      %v472 = vadd.f32 0.0, %v471
      %v473 = vpop.f32.mrb[0].mxu0
      %v474 = vadd.f32 0.0, %v473
      %475 = vdwg.mxu0
      %476 = vmatprep.subr.mxu0 %v338
      %477 = vmatpush1.msra.mxu0 %v337
      %478 = vmatprep.subr.mxu0 %v346
      %479 = vmatpush1.msra.mxu0 %v345
      %480 = vmatprep.subr.mxu0 %v354
      %481 = vmatpush1.msra.mxu0 %v353
      %482 = vmatprep.subr.mxu0 %v385
      %483 = vmatpush1.msra.mxu0 %v382
      %484 = vmatprep.subr.mxu0 0.0
      %485 = vmatpush1.msra.mxu0 0.0
      %486 = vmatprep.subr.mxu0 0.0
      %487 = vmatpush1.msra.mxu0 0.0
      %488 = vmatprep.subr.mxu0 0.0
      %489 = vmatpush1.msra.mxu0 0.0
      %490 = vmatprep.subr.mxu0 0.0
      %491 = vmatpush1.msra.mxu0 0.0
      %492 = vmatprep.subr.mxu0 0.0
      %493 = vmatpush1.msra.mxu0 0.0
      %494 = vmatprep.subr.mxu0 0.0
      %495 = vmatpush1.msra.mxu0 0.0
      %496 = vmatprep.subr.mxu0 0.0
      %497 = vmatpush1.msra.mxu0 0.0
      %498 = vmatprep.subr.mxu0 0.0
      %499 = vmatpush1.msra.mxu0 0.0
      %500 = vmatprep.subr.mxu0 0.0
      %501 = vmatpush1.msra.mxu0 0.0
      %502 = vmatprep.subr.mxu0 0.0
      %503 = vmatpush1.msra.mxu0 0.0
      %504 = vmatprep.subr.mxu0 0.0
      %505 = vmatpush1.msra.mxu0 0.0
      %506 = vmatprep.subr.mxu0 0.0
      %507 = vmatpush1.msra.mxu0 0.0
      %508 = vmatprep.subr.mxu0 0.0
      %509 = vmatpush1.msra.mxu0 0.0
      %510 = vmatprep.subr.mxu0 0.0
      %511 = vmatpush1.msra.mxu0 0.0
      %512 = vmatprep.subr.mxu0 0.0
      %513 = vmatpush1.msra.mxu0 0.0
      %514 = vmatprep.subr.mxu0 0.0
      %515 = vmatpush1.msra.mxu0 0.0
      %516 = vmatprep.subr.mxu0 0.0
      %517 = vmatpush1.msra.mxu0 0.0
      %518 = vmatprep.subr.mxu0 0.0
      %519 = vmatpush1.msra.mxu0 0.0
      %520 = vmatprep.subr.mxu0 0.0
      %521 = vmatpush1.msra.mxu0 0.0
      %522 = vmatprep.subr.mxu0 0.0
      %523 = vmatpush1.msra.mxu0 0.0
      %524 = vmatprep.subr.mxu0 0.0
      %525 = vmatpush1.msra.mxu0 0.0
      %526 = vmatprep.subr.mxu0 0.0
      %527 = vmatpush1.msra.mxu0 0.0
      %528 = vmatprep.subr.mxu0 0.0
      %529 = vmatpush1.msra.mxu0 0.0
      %530 = vmatprep.subr.mxu0 0.0
      %531 = vmatpush1.msra.mxu0 0.0
      %532 = vmatprep.subr.mxu0 0.0
      %533 = vmatpush1.msra.mxu0 0.0
      %534 = vmatprep.subr.mxu0 0.0
      %535 = vmatpush1.msra.mxu0 0.0
      %536 = vmatprep.subr.mxu0 0.0
      %537 = vmatpush1.msra.mxu0 0.0
      %538 = vmatprep.subr.mxu0 0.0
      %539 = vmatpush1.msra.mxu0 0.0
      %540 = vmatprep.mubr.f32.mxu0 0.0
      %541 = vmatmul.mubr.f32.gmra.mrb[0].mxu0 %v369
      %v542 = vpop.f32.mrb[0].mxu0
      %v543 = vadd.f32 0.0, %v542
      %v544 = vpop.f32.mrb[0].mxu0
      %v545 = vadd.f32 0.0, %v544
      %546 = vmatprep.mubr.f32.mxu0 0.0
      %547 = vmatmul.mubr.f32.gmra.mrb[0].mxu0 %v372
      %v548 = vpop.f32.mrb[0].mxu0
      %v549 = vadd.f32 0.0, %v548
      %v550 = vpop.f32.mrb[0].mxu0
      %v551 = vadd.f32 0.0, %v550
      %552 = vdwg.mxu0
      %553 = vmatprep.subr.mxu0 %v340
      %554 = vmatpush1.msra.mxu0 %v339
      %555 = vmatprep.subr.mxu0 %v348
      %556 = vmatpush1.msra.mxu0 %v347
      %557 = vmatprep.subr.mxu0 %v356
      %558 = vmatpush1.msra.mxu0 %v355
      %559 = vmatprep.subr.mxu0 %v391
      %560 = vmatpush1.msra.mxu0 %v388
      %561 = vmatprep.subr.mxu0 0.0
      %562 = vmatpush1.msra.mxu0 0.0
      %563 = vmatprep.subr.mxu0 0.0
      %564 = vmatpush1.msra.mxu0 0.0
      %565 = vmatprep.subr.mxu0 0.0
      %566 = vmatpush1.msra.mxu0 0.0
      %567 = vmatprep.subr.mxu0 0.0
      %568 = vmatpush1.msra.mxu0 0.0
      %569 = vmatprep.subr.mxu0 0.0
      %570 = vmatpush1.msra.mxu0 0.0
      %571 = vmatprep.subr.mxu0 0.0
      %572 = vmatpush1.msra.mxu0 0.0
      %573 = vmatprep.subr.mxu0 0.0
      %574 = vmatpush1.msra.mxu0 0.0
      %575 = vmatprep.subr.mxu0 0.0
      %576 = vmatpush1.msra.mxu0 0.0
      %577 = vmatprep.subr.mxu0 0.0
      %578 = vmatpush1.msra.mxu0 0.0
      %579 = vmatprep.subr.mxu0 0.0
      %580 = vmatpush1.msra.mxu0 0.0
      %581 = vmatprep.subr.mxu0 0.0
      %582 = vmatpush1.msra.mxu0 0.0
      %583 = vmatprep.subr.mxu0 0.0
      %584 = vmatpush1.msra.mxu0 0.0
      %585 = vmatprep.subr.mxu0 0.0
      %586 = vmatpush1.msra.mxu0 0.0
      %587 = vmatprep.subr.mxu0 0.0
      %588 = vmatpush1.msra.mxu0 0.0
      %589 = vmatprep.subr.mxu0 0.0
      %590 = vmatpush1.msra.mxu0 0.0
      %591 = vmatprep.subr.mxu0 0.0
      %592 = vmatpush1.msra.mxu0 0.0
      %593 = vmatprep.subr.mxu0 0.0
      %594 = vmatpush1.msra.mxu0 0.0
      %595 = vmatprep.subr.mxu0 0.0
      %596 = vmatpush1.msra.mxu0 0.0
      %597 = vmatprep.subr.mxu0 0.0
      %598 = vmatpush1.msra.mxu0 0.0
      %599 = vmatprep.subr.mxu0 0.0
      %600 = vmatpush1.msra.mxu0 0.0
      %601 = vmatprep.subr.mxu0 0.0
      %602 = vmatpush1.msra.mxu0 0.0
      %603 = vmatprep.subr.mxu0 0.0
      %604 = vmatpush1.msra.mxu0 0.0
      %605 = vmatprep.subr.mxu0 0.0
      %606 = vmatpush1.msra.mxu0 0.0
      %607 = vmatprep.subr.mxu0 0.0
      %608 = vmatpush1.msra.mxu0 0.0
      %609 = vmatprep.subr.mxu0 0.0
      %610 = vmatpush1.msra.mxu0 0.0
      %611 = vmatprep.subr.mxu0 0.0
      %612 = vmatpush1.msra.mxu0 0.0
      %613 = vmatprep.subr.mxu0 0.0
      %614 = vmatpush1.msra.mxu0 0.0
      %615 = vmatprep.subr.mxu0 0.0
      %616 = vmatpush1.msra.mxu0 0.0
      %617 = vmatprep.mubr.f32.mxu0 0.0
      %618 = vmatmul.mubr.f32.gmra.mrb[0].mxu0 %v369
      %v619 = vpop.f32.mrb[0].mxu0
      %v620 = vadd.f32 0.0, %v619
      %v621 = vpop.f32.mrb[0].mxu0
      %v622 = vadd.f32 0.0, %v621
      %623 = vmatprep.mubr.f32.mxu0 0.0
      %624 = vmatmul.mubr.f32.gmra.mrb[0].mxu0 %v372
      %v625 = vpop.f32.mrb[0].mxu0
      %v626 = vadd.f32 0.0, %v625
      %v627 = vpop.f32.mrb[0].mxu0
      %v628 = vadd.f32 0.0, %v627
      %629 = vdwg.mxu0
      %630 = vmatprep.subr.mxu0 %v342
      %631 = vmatpush1.msra.mxu0 %v341
      %632 = vmatprep.subr.mxu0 %v350
      %633 = vmatpush1.msra.mxu0 %v349
      %634 = vmatprep.subr.mxu0 %v358
      %635 = vmatpush1.msra.mxu0 %v357
      %636 = vmatprep.subr.mxu0 %v397
      %637 = vmatpush1.msra.mxu0 %v394
      %638 = vmatprep.subr.mxu0 0.0
      %639 = vmatpush1.msra.mxu0 0.0
      %640 = vmatprep.subr.mxu0 0.0
      %641 = vmatpush1.msra.mxu0 0.0
      %642 = vmatprep.subr.mxu0 0.0
      %643 = vmatpush1.msra.mxu0 0.0
      %644 = vmatprep.subr.mxu0 0.0
      %645 = vmatpush1.msra.mxu0 0.0
      %646 = vmatprep.subr.mxu0 0.0
      %647 = vmatpush1.msra.mxu0 0.0
      %648 = vmatprep.subr.mxu0 0.0
      %649 = vmatpush1.msra.mxu0 0.0
      %650 = vmatprep.subr.mxu0 0.0
      %651 = vmatpush1.msra.mxu0 0.0
      %652 = vmatprep.subr.mxu0 0.0
      %653 = vmatpush1.msra.mxu0 0.0
      %654 = vmatprep.subr.mxu0 0.0
      %655 = vmatpush1.msra.mxu0 0.0
      %656 = vmatprep.subr.mxu0 0.0
      %657 = vmatpush1.msra.mxu0 0.0
      %658 = vmatprep.subr.mxu0 0.0
      %659 = vmatpush1.msra.mxu0 0.0
      %660 = vmatprep.subr.mxu0 0.0
      %661 = vmatpush1.msra.mxu0 0.0
      %662 = vmatprep.subr.mxu0 0.0
      %663 = vmatpush1.msra.mxu0 0.0
      %664 = vmatprep.subr.mxu0 0.0
      %665 = vmatpush1.msra.mxu0 0.0
      %666 = vmatprep.subr.mxu0 0.0
      %667 = vmatpush1.msra.mxu0 0.0
      %668 = vmatprep.subr.mxu0 0.0
      %669 = vmatpush1.msra.mxu0 0.0
      %670 = vmatprep.subr.mxu0 0.0
      %671 = vmatpush1.msra.mxu0 0.0
      %672 = vmatprep.subr.mxu0 0.0
      %673 = vmatpush1.msra.mxu0 0.0
      %674 = vmatprep.subr.mxu0 0.0
      %675 = vmatpush1.msra.mxu0 0.0
      %676 = vmatprep.subr.mxu0 0.0
      %677 = vmatpush1.msra.mxu0 0.0
      %678 = vmatprep.subr.mxu0 0.0
      %679 = vmatpush1.msra.mxu0 0.0
      %680 = vmatprep.subr.mxu0 0.0
      %681 = vmatpush1.msra.mxu0 0.0
      %682 = vmatprep.subr.mxu0 0.0
      %683 = vmatpush1.msra.mxu0 0.0
      %684 = vmatprep.subr.mxu0 0.0
      %685 = vmatpush1.msra.mxu0 0.0
      %686 = vmatprep.subr.mxu0 0.0
      %687 = vmatpush1.msra.mxu0 0.0
      %688 = vmatprep.subr.mxu0 0.0
      %689 = vmatpush1.msra.mxu0 0.0
      %690 = vmatprep.subr.mxu0 0.0
      %691 = vmatpush1.msra.mxu0 0.0
      %692 = vmatprep.subr.mxu0 0.0
      %693 = vmatpush1.msra.mxu0 0.0
      %694 = vmatprep.mubr.f32.mxu0 0.0
      %695 = vmatmul.mubr.f32.gmra.mrb[0].mxu0 %v369
      %v696 = vpop.f32.mrb[0].mxu0
      %v697 = vadd.f32 0.0, %v696
      %v698 = vpop.f32.mrb[0].mxu0
      %v699 = vadd.f32 0.0, %v698
      %700 = vmatprep.mubr.f32.mxu0 0.0
      %701 = vmatmul.mubr.f32.gmra.mrb[0].mxu0 %v372
      %v702 = vpop.f32.mrb[0].mxu0
      %v703 = vadd.f32 0.0, %v702
      %v704 = vpop.f32.mrb[0].mxu0
      %v705 = vadd.f32 0.0, %v704
      %706 = vdwg.mxu0
      %v707 = vmax.f32 %v466, %v543
      %v708 = vmax.f32 %v468, %v545
      %v709 = vmax.f32 %v472, %v549
      %v710 = vmax.f32 %v474, %v551
      %v711 = vmax.f32 %v620, %v697
      %v712 = vmax.f32 %v622, %v699
      %v713 = vmax.f32 %v626, %v703
      %v714 = vmax.f32 %v628, %v705
      %v715 = vmax.f32 %v707, %v711
      %v716 = vmax.f32 %v708, %v712
      %v717 = vmax.f32 %v709, %v713
      %v718 = vmax.f32 %v710, %v714
      %v719 = vld [vmem:[%s2] sm:$0xff]
      %v720 = vld [vmem:[%s2 + $0x8] sm:$0xff]
      %722 = vset.pattern.permute.xlu0 0
      %723 = vperm.xlu0 %722, %v719
      %v724 = vpop.permute.xlu0 %723
      %727 = vset.pattern.permute.xlu0 0
      %728 = vperm.xlu0 %727, %v720
      %v729 = vpop.permute.xlu0 %728
      %v731 = vadd.f32 %v715, %v724
      %v732 = vadd.f32 %v716, %v724
      %v733 = vadd.f32 %v717, %v729
      %v734 = vadd.f32 %v718, %v729
      %v735 = vmax.f32 %v731, 0.0
      %v736 = vmax.f32 %v732, 0.0
      %v737 = vmax.f32 %v733, 0.0
      %v738 = vmax.f32 %v734, 0.0
      %743 = vrot.lane.b32.xlu0 %v735, 127
      %v744 = vpop.permute.xlu0 %743
      %745 = vrot.lane.b32.xlu0 %v736, 127
      %v746 = vpop.permute.xlu0 %745
      %747 = vrot.lane.b32.xlu0 %v737, 127
      %v748 = vpop.permute.xlu0 %747
      %749 = vrot.lane.b32.xlu0 %v738, 127
      %v750 = vpop.permute.xlu0 %749
      %vm751 = vcmask 1039360
      %v752 = vsel %vm751, %v744, %v746
      %v753 = vsel %vm751, %v748, %v750
      %v760 = vsel %vm751, %v746, %v744
      %v761 = vsel %vm751, %v750, %v748
      %762 = vrot.lane.b32.xlu0 %v735, 126
      %v763 = vpop.permute.xlu0 %762
      %764 = vrot.lane.b32.xlu0 %v736, 126
      %v765 = vpop.permute.xlu0 %764
      %766 = vrot.lane.b32.xlu0 %v737, 126
      %v767 = vpop.permute.xlu0 %766
      %768 = vrot.lane.b32.xlu0 %v738, 126
      %v769 = vpop.permute.xlu0 %768
      %vm770 = vcmask 1031168
      %v771 = vsel %vm770, %v763, %v765
      %v772 = vsel %vm770, %v767, %v769
      %v779 = vsel %vm770, %v765, %v763
      %v780 = vsel %vm770, %v769, %v767
      %781 = vrot.lane.b32.xlu0 %v735, 125
      %v782 = vpop.permute.xlu0 %781
      %783 = vrot.lane.b32.xlu0 %v736, 125
      %v784 = vpop.permute.xlu0 %783
      %785 = vrot.lane.b32.xlu0 %v737, 125
      %v786 = vpop.permute.xlu0 %785
      %787 = vrot.lane.b32.xlu0 %v738, 125
      %v788 = vpop.permute.xlu0 %787
      %vm789 = vcmask 1022976
      %v790 = vsel %vm789, %v782, %v784
      %v791 = vsel %vm789, %v786, %v788
      %v798 = vsel %vm789, %v784, %v782
      %v799 = vsel %vm789, %v788, %v786
      %800 = vrot.lane.b32.xlu0 %v735, 124
      %v801 = vpop.permute.xlu0 %800
      %802 = vrot.lane.b32.xlu0 %v736, 124
      %v803 = vpop.permute.xlu0 %802
      %804 = vrot.lane.b32.xlu0 %v737, 124
      %v805 = vpop.permute.xlu0 %804
      %806 = vrot.lane.b32.xlu0 %v738, 124
      %v807 = vpop.permute.xlu0 %806
      %vm808 = vcmask 1014784
      %v809 = vsel %vm808, %v801, %v803
      %v810 = vsel %vm808, %v805, %v807
      %v817 = vsel %vm808, %v803, %v801
      %v818 = vsel %vm808, %v807, %v805
      %819 = vrot.lane.b32.xlu0 %v735, 112
      %v820 = vpop.permute.xlu0 %819
      %821 = vrot.lane.b32.xlu0 %v736, 112
      %v822 = vpop.permute.xlu0 %821
      %823 = vrot.lane.b32.xlu0 %v737, 112
      %v824 = vpop.permute.xlu0 %823
      %825 = vrot.lane.b32.xlu0 %v738, 112
      %v826 = vpop.permute.xlu0 %825
      %vm827 = vcmask 916480
      %v828 = vsel %vm827, %v820, %v822
      %v829 = vsel %vm827, %v824, %v826
      %v836 = vsel %vm827, %v822, %v820
      %v837 = vsel %vm827, %v826, %v824
      %838 = vrot.lane.b32.xlu0 %v735, 111
      %v839 = vpop.permute.xlu0 %838
      %840 = vrot.lane.b32.xlu0 %v736, 111
      %v841 = vpop.permute.xlu0 %840
      %842 = vrot.lane.b32.xlu0 %v737, 111
      %v843 = vpop.permute.xlu0 %842
      %844 = vrot.lane.b32.xlu0 %v738, 111
      %v845 = vpop.permute.xlu0 %844
      %vm846 = vcmask 908288
      %v847 = vsel %vm846, %v839, %v841
      %v848 = vsel %vm846, %v843, %v845
      %v855 = vsel %vm846, %v841, %v839
      %v856 = vsel %vm846, %v845, %v843
      %857 = vrot.lane.b32.xlu0 %v735, 110
      %v858 = vpop.permute.xlu0 %857
      %859 = vrot.lane.b32.xlu0 %v736, 110
      %v860 = vpop.permute.xlu0 %859
      %861 = vrot.lane.b32.xlu0 %v737, 110
      %v862 = vpop.permute.xlu0 %861
      %863 = vrot.lane.b32.xlu0 %v738, 110
      %v864 = vpop.permute.xlu0 %863
      %vm865 = vcmask 900096
      %v866 = vsel %vm865, %v858, %v860
      %v867 = vsel %vm865, %v862, %v864
      %v874 = vsel %vm865, %v860, %v858
      %v875 = vsel %vm865, %v864, %v862
      %876 = vrot.lane.b32.xlu0 %v735, 109
      %v877 = vpop.permute.xlu0 %876
      %878 = vrot.lane.b32.xlu0 %v736, 109
      %v879 = vpop.permute.xlu0 %878
      %880 = vrot.lane.b32.xlu0 %v737, 109
      %v881 = vpop.permute.xlu0 %880
      %882 = vrot.lane.b32.xlu0 %v738, 109
      %v883 = vpop.permute.xlu0 %882
      %vm884 = vcmask 891904
      %v885 = vsel %vm884, %v877, %v879
      %v886 = vsel %vm884, %v881, %v883
      %v893 = vsel %vm884, %v879, %v877
      %v894 = vsel %vm884, %v883, %v881
      %895 = vrot.lane.b32.xlu0 %v735, 108
      %v896 = vpop.permute.xlu0 %895
      %897 = vrot.lane.b32.xlu0 %v736, 108
      %v898 = vpop.permute.xlu0 %897
      %899 = vrot.lane.b32.xlu0 %v737, 108
      %v900 = vpop.permute.xlu0 %899
      %901 = vrot.lane.b32.xlu0 %v738, 108
      %v902 = vpop.permute.xlu0 %901
      %vm903 = vcmask 883712
      %v904 = vsel %vm903, %v896, %v898
      %v905 = vsel %vm903, %v900, %v902
      %v912 = vsel %vm903, %v898, %v896
      %v913 = vsel %vm903, %v902, %v900
      %914 = vrot.lane.b32.xlu0 %v735, 96
      %v915 = vpop.permute.xlu0 %914
      %916 = vrot.lane.b32.xlu0 %v736, 96
      %v917 = vpop.permute.xlu0 %916
      %918 = vrot.lane.b32.xlu0 %v737, 96
      %v919 = vpop.permute.xlu0 %918
      %920 = vrot.lane.b32.xlu0 %v738, 96
      %v921 = vpop.permute.xlu0 %920
      %vm922 = vcmask 785408
      %v923 = vsel %vm922, %v915, %v917
      %v924 = vsel %vm922, %v919, %v921
      %v931 = vsel %vm922, %v917, %v915
      %v932 = vsel %vm922, %v921, %v919
      %933 = vrot.lane.b32.xlu0 %v735, 95
      %v934 = vpop.permute.xlu0 %933
      %935 = vrot.lane.b32.xlu0 %v736, 95
      %v936 = vpop.permute.xlu0 %935
      %937 = vrot.lane.b32.xlu0 %v737, 95
      %v938 = vpop.permute.xlu0 %937
      %939 = vrot.lane.b32.xlu0 %v738, 95
      %v940 = vpop.permute.xlu0 %939
      %vm941 = vcmask 777216
      %v942 = vsel %vm941, %v934, %v936
      %v943 = vsel %vm941, %v938, %v940
      %v950 = vsel %vm941, %v936, %v934
      %v951 = vsel %vm941, %v940, %v938
      %952 = vrot.lane.b32.xlu0 %v735, 94
      %v953 = vpop.permute.xlu0 %952
      %954 = vrot.lane.b32.xlu0 %v736, 94
      %v955 = vpop.permute.xlu0 %954
      %956 = vrot.lane.b32.xlu0 %v737, 94
      %v957 = vpop.permute.xlu0 %956
      %958 = vrot.lane.b32.xlu0 %v738, 94
      %v959 = vpop.permute.xlu0 %958
      %vm960 = vcmask 769024
      %v961 = vsel %vm960, %v953, %v955
      %v962 = vsel %vm960, %v957, %v959
      %v969 = vsel %vm960, %v955, %v953
      %v970 = vsel %vm960, %v959, %v957
      %971 = vrot.lane.b32.xlu0 %v735, 93
      %v972 = vpop.permute.xlu0 %971
      %973 = vrot.lane.b32.xlu0 %v736, 93
      %v974 = vpop.permute.xlu0 %973
      %975 = vrot.lane.b32.xlu0 %v737, 93
      %v976 = vpop.permute.xlu0 %975
      %977 = vrot.lane.b32.xlu0 %v738, 93
      %v978 = vpop.permute.xlu0 %977
      %vm979 = vcmask 760832
      %v980 = vsel %vm979, %v972, %v974
      %v981 = vsel %vm979, %v976, %v978
      %v988 = vsel %vm979, %v974, %v972
      %v989 = vsel %vm979, %v978, %v976
      %990 = vrot.lane.b32.xlu0 %v735, 92
      %v991 = vpop.permute.xlu0 %990
      %992 = vrot.lane.b32.xlu0 %v736, 92
      %v993 = vpop.permute.xlu0 %992
      %994 = vrot.lane.b32.xlu0 %v737, 92
      %v995 = vpop.permute.xlu0 %994
      %996 = vrot.lane.b32.xlu0 %v738, 92
      %v997 = vpop.permute.xlu0 %996
      %vm998 = vcmask 752640
      %v999 = vsel %vm998, %v991, %v993
      %v1000 = vsel %vm998, %v995, %v997
      %v1007 = vsel %vm998, %v993, %v991
      %v1008 = vsel %vm998, %v997, %v995
      %1009 = vrot.lane.b32.xlu0 %v735, 80
      %v1010 = vpop.permute.xlu0 %1009
      %1011 = vrot.lane.b32.xlu0 %v736, 80
      %v1012 = vpop.permute.xlu0 %1011
      %1013 = vrot.lane.b32.xlu0 %v737, 80
      %v1014 = vpop.permute.xlu0 %1013
      %1015 = vrot.lane.b32.xlu0 %v738, 80
      %v1016 = vpop.permute.xlu0 %1015
      %vm1017 = vcmask 654336
      %v1018 = vsel %vm1017, %v1010, %v1012
      %v1019 = vsel %vm1017, %v1014, %v1016
      %v1026 = vsel %vm1017, %v1012, %v1010
      %v1027 = vsel %vm1017, %v1016, %v1014
      %1028 = vrot.lane.b32.xlu0 %v735, 79
      %v1029 = vpop.permute.xlu0 %1028
      %1030 = vrot.lane.b32.xlu0 %v736, 79
      %v1031 = vpop.permute.xlu0 %1030
      %1032 = vrot.lane.b32.xlu0 %v737, 79
      %v1033 = vpop.permute.xlu0 %1032
      %1034 = vrot.lane.b32.xlu0 %v738, 79
      %v1035 = vpop.permute.xlu0 %1034
      %vm1036 = vcmask 646144
      %v1037 = vsel %vm1036, %v1029, %v1031
      %v1038 = vsel %vm1036, %v1033, %v1035
      %v1045 = vsel %vm1036, %v1031, %v1029
      %v1046 = vsel %vm1036, %v1035, %v1033
      %1047 = vrot.lane.b32.xlu0 %v735, 78
      %v1048 = vpop.permute.xlu0 %1047
      %1049 = vrot.lane.b32.xlu0 %v736, 78
      %v1050 = vpop.permute.xlu0 %1049
      %1051 = vrot.lane.b32.xlu0 %v737, 78
      %v1052 = vpop.permute.xlu0 %1051
      %1053 = vrot.lane.b32.xlu0 %v738, 78
      %v1054 = vpop.permute.xlu0 %1053
      %vm1055 = vcmask 637952
      %v1056 = vsel %vm1055, %v1048, %v1050
      %v1057 = vsel %vm1055, %v1052, %v1054
      %v1064 = vsel %vm1055, %v1050, %v1048
      %v1065 = vsel %vm1055, %v1054, %v1052
      %1066 = vrot.lane.b32.xlu0 %v735, 77
      %v1067 = vpop.permute.xlu0 %1066
      %1068 = vrot.lane.b32.xlu0 %v736, 77
      %v1069 = vpop.permute.xlu0 %1068
      %1070 = vrot.lane.b32.xlu0 %v737, 77
      %v1071 = vpop.permute.xlu0 %1070
      %1072 = vrot.lane.b32.xlu0 %v738, 77
      %v1073 = vpop.permute.xlu0 %1072
      %vm1074 = vcmask 629760
      %v1075 = vsel %vm1074, %v1067, %v1069
      %v1076 = vsel %vm1074, %v1071, %v1073
      %v1083 = vsel %vm1074, %v1069, %v1067
      %v1084 = vsel %vm1074, %v1073, %v1071
      %1085 = vrot.lane.b32.xlu0 %v735, 76
      %v1086 = vpop.permute.xlu0 %1085
      %1087 = vrot.lane.b32.xlu0 %v736, 76
      %v1088 = vpop.permute.xlu0 %1087
      %1089 = vrot.lane.b32.xlu0 %v737, 76
      %v1090 = vpop.permute.xlu0 %1089
      %1091 = vrot.lane.b32.xlu0 %v738, 76
      %v1092 = vpop.permute.xlu0 %1091
      %vm1093 = vcmask 621568
      %v1094 = vsel %vm1093, %v1086, %v1088
      %v1095 = vsel %vm1093, %v1090, %v1092
      %v1102 = vsel %vm1093, %v1088, %v1086
      %v1103 = vsel %vm1093, %v1092, %v1090
      %1104 = vrot.lane.b32.xlu0 %v735, 64
      %v1105 = vpop.permute.xlu0 %1104
      %1106 = vrot.lane.b32.xlu0 %v736, 64
      %v1107 = vpop.permute.xlu0 %1106
      %1108 = vrot.lane.b32.xlu0 %v737, 64
      %v1109 = vpop.permute.xlu0 %1108
      %1110 = vrot.lane.b32.xlu0 %v738, 64
      %v1111 = vpop.permute.xlu0 %1110
      %vm1112 = vcmask 523264
      %v1113 = vsel %vm1112, %v1105, %v1107
      %v1114 = vsel %vm1112, %v1109, %v1111
      %v1121 = vsel %vm1112, %v1107, %v1105
      %v1122 = vsel %vm1112, %v1111, %v1109
      %1123 = vrot.lane.b32.xlu0 %v735, 63
      %v1124 = vpop.permute.xlu0 %1123
      %1125 = vrot.lane.b32.xlu0 %v736, 63
      %v1126 = vpop.permute.xlu0 %1125
      %1127 = vrot.lane.b32.xlu0 %v737, 63
      %v1128 = vpop.permute.xlu0 %1127
      %1129 = vrot.lane.b32.xlu0 %v738, 63
      %v1130 = vpop.permute.xlu0 %1129
      %vm1131 = vcmask 515072
      %v1132 = vsel %vm1131, %v1124, %v1126
      %v1133 = vsel %vm1131, %v1128, %v1130
      %v1140 = vsel %vm1131, %v1126, %v1124
      %v1141 = vsel %vm1131, %v1130, %v1128
      %1142 = vrot.lane.b32.xlu0 %v735, 62
      %v1143 = vpop.permute.xlu0 %1142
      %1144 = vrot.lane.b32.xlu0 %v736, 62
      %v1145 = vpop.permute.xlu0 %1144
      %1146 = vrot.lane.b32.xlu0 %v737, 62
      %v1147 = vpop.permute.xlu0 %1146
      %1148 = vrot.lane.b32.xlu0 %v738, 62
      %v1149 = vpop.permute.xlu0 %1148
      %vm1150 = vcmask 506880
      %v1151 = vsel %vm1150, %v1143, %v1145
      %v1152 = vsel %vm1150, %v1147, %v1149
      %v1159 = vsel %vm1150, %v1145, %v1143
      %v1160 = vsel %vm1150, %v1149, %v1147
      %1161 = vrot.lane.b32.xlu0 %v735, 61
      %v1162 = vpop.permute.xlu0 %1161
      %1163 = vrot.lane.b32.xlu0 %v736, 61
      %v1164 = vpop.permute.xlu0 %1163
      %1165 = vrot.lane.b32.xlu0 %v737, 61
      %v1166 = vpop.permute.xlu0 %1165
      %1167 = vrot.lane.b32.xlu0 %v738, 61
      %v1168 = vpop.permute.xlu0 %1167
      %vm1169 = vcmask 498688
      %v1170 = vsel %vm1169, %v1162, %v1164
      %v1171 = vsel %vm1169, %v1166, %v1168
      %v1178 = vsel %vm1169, %v1164, %v1162
      %v1179 = vsel %vm1169, %v1168, %v1166
      %1180 = vrot.lane.b32.xlu0 %v735, 60
      %v1181 = vpop.permute.xlu0 %1180
      %1182 = vrot.lane.b32.xlu0 %v736, 60
      %v1183 = vpop.permute.xlu0 %1182
      %1184 = vrot.lane.b32.xlu0 %v737, 60
      %v1185 = vpop.permute.xlu0 %1184
      %1186 = vrot.lane.b32.xlu0 %v738, 60
      %v1187 = vpop.permute.xlu0 %1186
      %vm1188 = vcmask 490496
      %v1189 = vsel %vm1188, %v1181, %v1183
      %v1190 = vsel %vm1188, %v1185, %v1187
      %v1197 = vsel %vm1188, %v1183, %v1181
      %v1198 = vsel %vm1188, %v1187, %v1185
      %v1199 = vld [vmem:[%s3] sm:$0xff]
      %v1200 = vld [vmem:[%s3 + $0x8] sm:$0xff]
      %v1201 = vld [vmem:[%s3 + $0x10] sm:$0xff]
      %v1202 = vld [vmem:[%s3 + $0x18] sm:$0xff]
      %v1203 = vld [vmem:[%s3 + $0x20] sm:$0xff]
      %v1204 = vld [vmem:[%s3 + $0x28] sm:$0xff]
      %v1205 = vld [vmem:[%s3 + $0x30] sm:$0xff]
      %v1206 = vld [vmem:[%s3 + $0x38] sm:$0xff]
      %v1207 = vld [vmem:[%s3 + $0x40] sm:$0xff]
      %v1208 = vld [vmem:[%s3 + $0x48] sm:$0xff]
      %v1209 = vld [vmem:[%s3 + $0x50] sm:$0xff]
      %v1210 = vld [vmem:[%s3 + $0x58] sm:$0xff]
      %v1211 = vld [vmem:[%s3 + $0x60] sm:$0xff]
      %v1212 = vld [vmem:[%s3 + $0x68] sm:$0xff]
      %v1213 = vld [vmem:[%s3 + $0x70] sm:$0xff]
      %v1214 = vld [vmem:[%s3 + $0x78] sm:$0xff]
      %v1215 = vld [vmem:[%s4] sm:$0xff]
      %v1216 = vld [vmem:[%s4 + $0x8] sm:$0xff]
      %v1217 = vld [vmem:[%s4 + $0x10] sm:$0xff]
      %v1218 = vld [vmem:[%s4 + $0x18] sm:$0xff]
      %1220 = vset.pattern.permute.xlu0 0
      %1221 = vperm.xlu0 %1220, %v1215
      %v1222 = vpop.permute.xlu0 %1221
      %1225 = vset.pattern.permute.xlu0 0
      %1226 = vperm.xlu0 %1225, %v1216
      %v1227 = vpop.permute.xlu0 %1226
      %1230 = vset.pattern.permute.xlu0 0
      %1231 = vperm.xlu0 %1230, %v1217
      %v1232 = vpop.permute.xlu0 %1231
      %1235 = vset.pattern.permute.xlu0 0
      %1236 = vperm.xlu0 %1235, %v1218
      %v1237 = vpop.permute.xlu0 %1236
      %vm1239 = vcmask 130048
      %v1241 = vsel %vm1239, %v1202, 0
      %v1244 = vsel %vm1239, %v1206, 0
      %v1247 = vsel %vm1239, %v1210, 0
      %v1250 = vsel %vm1239, %v1214, 0
      %1252 = vmatprep.subr.mxu0 %v736
      %1253 = vmatpush1.msra.mxu0 %v735
      %1254 = vmatprep.subr.mxu0 %v738
      %1255 = vmatpush1.msra.mxu0 %v737
      %1256 = vmatprep.subr.mxu0 %v760
      %1257 = vmatpush1.msra.mxu0 %v752
      %1258 = vmatprep.subr.mxu0 %v761
      %1259 = vmatpush1.msra.mxu0 %v753
      %1260 = vmatprep.subr.mxu0 %v779
      %1261 = vmatpush1.msra.mxu0 %v771
      %1262 = vmatprep.subr.mxu0 %v780
      %1263 = vmatpush1.msra.mxu0 %v772
      %1264 = vmatprep.subr.mxu0 %v798
      %1265 = vmatpush1.msra.mxu0 %v790
      %1266 = vmatprep.subr.mxu0 %v799
      %1267 = vmatpush1.msra.mxu0 %v791
      %1268 = vmatprep.subr.mxu0 %v817
      %1269 = vmatpush1.msra.mxu0 %v809
      %1270 = vmatprep.subr.mxu0 %v818
      %1271 = vmatpush1.msra.mxu0 %v810
      %1272 = vmatprep.subr.mxu0 %v836
      %1273 = vmatpush1.msra.mxu0 %v828
      %1274 = vmatprep.subr.mxu0 %v837
      %1275 = vmatpush1.msra.mxu0 %v829
      %1276 = vmatprep.subr.mxu0 %v855
      %1277 = vmatpush1.msra.mxu0 %v847
      %1278 = vmatprep.subr.mxu0 %v856
      %1279 = vmatpush1.msra.mxu0 %v848
      %1280 = vmatprep.subr.mxu0 %v874
      %1281 = vmatpush1.msra.mxu0 %v866
      %1282 = vmatprep.subr.mxu0 %v875
      %1283 = vmatpush1.msra.mxu0 %v867
      %1284 = vmatprep.subr.mxu0 %v893
      %1285 = vmatpush1.msra.mxu0 %v885
      %1286 = vmatprep.subr.mxu0 %v894
      %1287 = vmatpush1.msra.mxu0 %v886
      %1288 = vmatprep.subr.mxu0 %v912
      %1289 = vmatpush1.msra.mxu0 %v904
      %1290 = vmatprep.subr.mxu0 %v913
      %1291 = vmatpush1.msra.mxu0 %v905
      %1292 = vmatprep.subr.mxu0 %v931
      %1293 = vmatpush1.msra.mxu0 %v923
      %1294 = vmatprep.subr.mxu0 %v932
      %1295 = vmatpush1.msra.mxu0 %v924
      %1296 = vmatprep.subr.mxu0 %v950
      %1297 = vmatpush1.msra.mxu0 %v942
      %1298 = vmatprep.subr.mxu0 %v951
      %1299 = vmatpush1.msra.mxu0 %v943
      %1300 = vmatprep.subr.mxu0 %v969
      %1301 = vmatpush1.msra.mxu0 %v961
      %1302 = vmatprep.subr.mxu0 %v970
      %1303 = vmatpush1.msra.mxu0 %v962
      %1304 = vmatprep.subr.mxu0 %v988
      %1305 = vmatpush1.msra.mxu0 %v980
      %1306 = vmatprep.subr.mxu0 %v989
      %1307 = vmatpush1.msra.mxu0 %v981
      %1308 = vmatprep.subr.mxu0 %v1007
      %1309 = vmatpush1.msra.mxu0 %v999
      %1310 = vmatprep.subr.mxu0 %v1008
      %1311 = vmatpush1.msra.mxu0 %v1000
      %1312 = vmatprep.subr.mxu0 %v1026
      %1313 = vmatpush1.msra.mxu0 %v1018
      %1314 = vmatprep.subr.mxu0 %v1027
      %1315 = vmatpush1.msra.mxu0 %v1019
      %1316 = vmatprep.mubr.f32.mxu0 %v1200
      %1317 = vmatmul.mubr.f32.gmra.mrb[0].mxu0 %v1199
      %v1318 = vpop.f32.mrb[0].mxu0
      %v1319 = vadd.f32 %v1222, %v1318
      %v1320 = vpop.f32.mrb[0].mxu0
      %v1321 = vadd.f32 %v1222, %v1320
      %1322 = vmatprep.mubr.f32.mxu0 %v1204
      %1323 = vmatmul.mubr.f32.gmra.mrb[0].mxu0 %v1203
      %v1324 = vpop.f32.mrb[0].mxu0
      %v1325 = vadd.f32 %v1227, %v1324
      %v1326 = vpop.f32.mrb[0].mxu0
      %v1327 = vadd.f32 %v1227, %v1326
      %1328 = vmatprep.mubr.f32.mxu0 %v1208
      %1329 = vmatmul.mubr.f32.gmra.mrb[0].mxu0 %v1207
      %v1330 = vpop.f32.mrb[0].mxu0
      %v1331 = vadd.f32 %v1232, %v1330
      %v1332 = vpop.f32.mrb[0].mxu0
      %v1333 = vadd.f32 %v1232, %v1332
      %1334 = vmatprep.mubr.f32.mxu0 %v1212
      %1335 = vmatmul.mubr.f32.gmra.mrb[0].mxu0 %v1211
      %v1336 = vpop.f32.mrb[0].mxu0
      %v1337 = vadd.f32 %v1237, %v1336
      %v1338 = vpop.f32.mrb[0].mxu0
      %v1339 = vadd.f32 %v1237, %v1338
      %1340 = vdwg.mxu0
      %1341 = vmatprep.subr.mxu0 %v1045
      %1342 = vmatpush1.msra.mxu0 %v1037
      %1343 = vmatprep.subr.mxu0 %v1046
      %1344 = vmatpush1.msra.mxu0 %v1038
      %1345 = vmatprep.subr.mxu0 %v1064
      %1346 = vmatpush1.msra.mxu0 %v1056
      %1347 = vmatprep.subr.mxu0 %v1065
      %1348 = vmatpush1.msra.mxu0 %v1057
      %1349 = vmatprep.subr.mxu0 %v1083
      %1350 = vmatpush1.msra.mxu0 %v1075
      %1351 = vmatprep.subr.mxu0 %v1084
      %1352 = vmatpush1.msra.mxu0 %v1076
      %1353 = vmatprep.subr.mxu0 %v1102
      %1354 = vmatpush1.msra.mxu0 %v1094
      %1355 = vmatprep.subr.mxu0 %v1103
      %1356 = vmatpush1.msra.mxu0 %v1095
      %1357 = vmatprep.subr.mxu0 %v1121
      %1358 = vmatpush1.msra.mxu0 %v1113
      %1359 = vmatprep.subr.mxu0 %v1122
      %1360 = vmatpush1.msra.mxu0 %v1114
      %1361 = vmatprep.subr.mxu0 %v1140
      %1362 = vmatpush1.msra.mxu0 %v1132
      %1363 = vmatprep.subr.mxu0 %v1141
      %1364 = vmatpush1.msra.mxu0 %v1133
      %1365 = vmatprep.subr.mxu0 %v1159
      %1366 = vmatpush1.msra.mxu0 %v1151
      %1367 = vmatprep.subr.mxu0 %v1160
      %1368 = vmatpush1.msra.mxu0 %v1152
      %1369 = vmatprep.subr.mxu0 %v1178
      %1370 = vmatpush1.msra.mxu0 %v1170
      %1371 = vmatprep.subr.mxu0 %v1179
      %1372 = vmatpush1.msra.mxu0 %v1171
      %1373 = vmatprep.subr.mxu0 %v1197
      %1374 = vmatpush1.msra.mxu0 %v1189
      %1375 = vmatprep.subr.mxu0 %v1198
      %1376 = vmatpush1.msra.mxu0 %v1190
      %1377 = vmatprep.subr.mxu0 0.0
      %1378 = vmatpush1.msra.mxu0 0.0
      %1379 = vmatprep.subr.mxu0 0.0
      %1380 = vmatpush1.msra.mxu0 0.0
      %1381 = vmatprep.subr.mxu0 0.0
      %1382 = vmatpush1.msra.mxu0 0.0
      %1383 = vmatprep.subr.mxu0 0.0
      %1384 = vmatpush1.msra.mxu0 0.0
      %1385 = vmatprep.subr.mxu0 0.0
      %1386 = vmatpush1.msra.mxu0 0.0
      %1387 = vmatprep.subr.mxu0 0.0
      %1388 = vmatpush1.msra.mxu0 0.0
      %1389 = vmatprep.subr.mxu0 0.0
      %1390 = vmatpush1.msra.mxu0 0.0
      %1391 = vmatprep.subr.mxu0 0.0
      %1392 = vmatpush1.msra.mxu0 0.0
      %1393 = vmatprep.subr.mxu0 0.0
      %1394 = vmatpush1.msra.mxu0 0.0
      %1395 = vmatprep.subr.mxu0 0.0
      %1396 = vmatpush1.msra.mxu0 0.0
      %1397 = vmatprep.subr.mxu0 0.0
      %1398 = vmatpush1.msra.mxu0 0.0
      %1399 = vmatprep.subr.mxu0 0.0
      %1400 = vmatpush1.msra.mxu0 0.0
      %1401 = vmatprep.subr.mxu0 0.0
      %1402 = vmatpush1.msra.mxu0 0.0
      %1403 = vmatprep.subr.mxu0 0.0
      %1404 = vmatpush1.msra.mxu0 0.0
      %1405 = vmatprep.mubr.f32.mxu0 %v1241
      %1406 = vmatmul.mubr.f32.gmra.mrb[0].mxu0 %v1201
      %v1407 = vpop.f32.mrb[0].mxu0
      %v1408 = vadd.f32 %v1319, %v1407
      %v1409 = vpop.f32.mrb[0].mxu0
      %v1410 = vadd.f32 %v1321, %v1409
      %1411 = vmatprep.mubr.f32.mxu0 %v1244
      %1412 = vmatmul.mubr.f32.gmra.mrb[0].mxu0 %v1205
      %v1413 = vpop.f32.mrb[0].mxu0
      %v1414 = vadd.f32 %v1325, %v1413
      %v1415 = vpop.f32.mrb[0].mxu0
      %v1416 = vadd.f32 %v1327, %v1415
      %1417 = vmatprep.mubr.f32.mxu0 %v1247
      %1418 = vmatmul.mubr.f32.gmra.mrb[0].mxu0 %v1209
      %v1419 = vpop.f32.mrb[0].mxu0
      %v1420 = vadd.f32 %v1331, %v1419
      %v1421 = vpop.f32.mrb[0].mxu0
      %v1422 = vadd.f32 %v1333, %v1421
      %1423 = vmatprep.mubr.f32.mxu0 %v1250
      %1424 = vmatmul.mubr.f32.gmra.mrb[0].mxu0 %v1213
      %v1425 = vpop.f32.mrb[0].mxu0
      %v1426 = vadd.f32 %v1337, %v1425
      %v1427 = vpop.f32.mrb[0].mxu0
      %v1428 = vadd.f32 %v1339, %v1427
      %1429 = vdwg.mxu0
      %1438 = vrot.lane.b32.xlu0 %v1408, 127
      %v1439 = vpop.permute.xlu0 %1438
      %1440 = vrot.lane.b32.xlu0 %v1410, 127
      %v1441 = vpop.permute.xlu0 %1440
      %1442 = vrot.lane.b32.xlu0 %v1414, 127
      %v1443 = vpop.permute.xlu0 %1442
      %1444 = vrot.lane.b32.xlu0 %v1416, 127
      %v1445 = vpop.permute.xlu0 %1444
      %1446 = vrot.lane.b32.xlu0 %v1420, 127
      %v1447 = vpop.permute.xlu0 %1446
      %1448 = vrot.lane.b32.xlu0 %v1422, 127
      %v1449 = vpop.permute.xlu0 %1448
      %1450 = vrot.lane.b32.xlu0 %v1426, 127
      %v1451 = vpop.permute.xlu0 %1450
      %1452 = vrot.lane.b32.xlu0 %v1428, 127
      %v1453 = vpop.permute.xlu0 %1452
      %v1454 = vsel %vm751, %v1439, %v1441
      %v1455 = vsel %vm751, %v1443, %v1445
      %v1456 = vsel %vm751, %v1447, %v1449
      %v1457 = vsel %vm751, %v1451, %v1453
      %v1470 = vsel %vm751, %v1441, %v1439
      %v1471 = vsel %vm751, %v1445, %v1443
      %v1472 = vsel %vm751, %v1449, %v1447
      %v1473 = vsel %vm751, %v1453, %v1451
      %v1474 = vmax.f32 %v1408, %v1454
      %v1475 = vmax.f32 %v1410, %v1470
      %v1476 = vmax.f32 %v1414, %v1455
      %v1477 = vmax.f32 %v1416, %v1471
      %v1478 = vmax.f32 %v1420, %v1456
      %v1479 = vmax.f32 %v1422, %v1472
      %v1480 = vmax.f32 %v1426, %v1457
      %v1481 = vmax.f32 %v1428, %v1473
      %1482 = vrot.lane.b32.xlu0 %v1408, 112
      %v1483 = vpop.permute.xlu0 %1482
      %1484 = vrot.lane.b32.xlu0 %v1410, 112
      %v1485 = vpop.permute.xlu0 %1484
      %1486 = vrot.lane.b32.xlu0 %v1414, 112
      %v1487 = vpop.permute.xlu0 %1486
      %1488 = vrot.lane.b32.xlu0 %v1416, 112
      %v1489 = vpop.permute.xlu0 %1488
      %1490 = vrot.lane.b32.xlu0 %v1420, 112
      %v1491 = vpop.permute.xlu0 %1490
      %1492 = vrot.lane.b32.xlu0 %v1422, 112
      %v1493 = vpop.permute.xlu0 %1492
      %1494 = vrot.lane.b32.xlu0 %v1426, 112
      %v1495 = vpop.permute.xlu0 %1494
      %1496 = vrot.lane.b32.xlu0 %v1428, 112
      %v1497 = vpop.permute.xlu0 %1496
      %v1498 = vsel %vm827, %v1483, %v1485
      %v1499 = vsel %vm827, %v1487, %v1489
      %v1500 = vsel %vm827, %v1491, %v1493
      %v1501 = vsel %vm827, %v1495, %v1497
      %v1514 = vsel %vm827, %v1485, %v1483
      %v1515 = vsel %vm827, %v1489, %v1487
      %v1516 = vsel %vm827, %v1493, %v1491
      %v1517 = vsel %vm827, %v1497, %v1495
      %v1518 = vmax.f32 %v1474, %v1498
      %v1519 = vmax.f32 %v1475, %v1514
      %v1520 = vmax.f32 %v1476, %v1499
      %v1521 = vmax.f32 %v1477, %v1515
      %v1522 = vmax.f32 %v1478, %v1500
      %v1523 = vmax.f32 %v1479, %v1516
      %v1524 = vmax.f32 %v1480, %v1501
      %v1525 = vmax.f32 %v1481, %v1517
      %1526 = vrot.lane.b32.xlu0 %v1408, 111
      %v1527 = vpop.permute.xlu0 %1526
      %1528 = vrot.lane.b32.xlu0 %v1410, 111
      %v1529 = vpop.permute.xlu0 %1528
      %1530 = vrot.lane.b32.xlu0 %v1414, 111
      %v1531 = vpop.permute.xlu0 %1530
      %1532 = vrot.lane.b32.xlu0 %v1416, 111
      %v1533 = vpop.permute.xlu0 %1532
      %1534 = vrot.lane.b32.xlu0 %v1420, 111
      %v1535 = vpop.permute.xlu0 %1534
      %1536 = vrot.lane.b32.xlu0 %v1422, 111
      %v1537 = vpop.permute.xlu0 %1536
      %1538 = vrot.lane.b32.xlu0 %v1426, 111
      %v1539 = vpop.permute.xlu0 %1538
      %1540 = vrot.lane.b32.xlu0 %v1428, 111
      %v1541 = vpop.permute.xlu0 %1540
      %v1542 = vsel %vm846, %v1527, %v1529
      %v1543 = vsel %vm846, %v1531, %v1533
      %v1544 = vsel %vm846, %v1535, %v1537
      %v1545 = vsel %vm846, %v1539, %v1541
      %v1558 = vsel %vm846, %v1529, %v1527
      %v1559 = vsel %vm846, %v1533, %v1531
      %v1560 = vsel %vm846, %v1537, %v1535
      %v1561 = vsel %vm846, %v1541, %v1539
      %v1562 = vmax.f32 %v1518, %v1542
      %v1563 = vmax.f32 %v1519, %v1558
      %v1564 = vmax.f32 %v1520, %v1543
      %v1565 = vmax.f32 %v1521, %v1559
      %v1566 = vmax.f32 %v1522, %v1544
      %v1567 = vmax.f32 %v1523, %v1560
      %v1568 = vmax.f32 %v1524, %v1545
      %v1569 = vmax.f32 %v1525, %v1561
      %v1570 = vmax.f32 %v1562, 0.0
      %v1571 = vmax.f32 %v1563, 0.0
      %v1572 = vmax.f32 %v1564, 0.0
      %v1573 = vmax.f32 %v1565, 0.0
      %v1574 = vmax.f32 %v1566, 0.0
      %v1575 = vmax.f32 %v1567, 0.0
      %v1576 = vmax.f32 %v1568, 0.0
      %v1577 = vmax.f32 %v1569, 0.0
      %1586 = vrot.lane.b32.xlu0 %v1570, 126
      %v1587 = vpop.permute.xlu0 %1586
      %1588 = vrot.lane.b32.xlu0 %v1571, 126
      %v1589 = vpop.permute.xlu0 %1588
      %1590 = vrot.lane.b32.xlu0 %v1572, 126
      %v1591 = vpop.permute.xlu0 %1590
      %1592 = vrot.lane.b32.xlu0 %v1573, 126
      %v1593 = vpop.permute.xlu0 %1592
      %1594 = vrot.lane.b32.xlu0 %v1574, 126
      %v1595 = vpop.permute.xlu0 %1594
      %1596 = vrot.lane.b32.xlu0 %v1575, 126
      %v1597 = vpop.permute.xlu0 %1596
      %1598 = vrot.lane.b32.xlu0 %v1576, 126
      %v1599 = vpop.permute.xlu0 %1598
      %1600 = vrot.lane.b32.xlu0 %v1577, 126
      %v1601 = vpop.permute.xlu0 %1600
      %v1602 = vsel %vm770, %v1587, %v1589
      %v1603 = vsel %vm770, %v1591, %v1593
      %v1604 = vsel %vm770, %v1595, %v1597
      %v1605 = vsel %vm770, %v1599, %v1601
      %v1618 = vsel %vm770, %v1589, %v1587
      %v1619 = vsel %vm770, %v1593, %v1591
      %v1620 = vsel %vm770, %v1597, %v1595
      %v1621 = vsel %vm770, %v1601, %v1599
      %1622 = vrot.lane.b32.xlu0 %v1570, 124
      %v1623 = vpop.permute.xlu0 %1622
      %1624 = vrot.lane.b32.xlu0 %v1571, 124
      %v1625 = vpop.permute.xlu0 %1624
      %1626 = vrot.lane.b32.xlu0 %v1572, 124
      %v1627 = vpop.permute.xlu0 %1626
      %1628 = vrot.lane.b32.xlu0 %v1573, 124
      %v1629 = vpop.permute.xlu0 %1628
      %1630 = vrot.lane.b32.xlu0 %v1574, 124
      %v1631 = vpop.permute.xlu0 %1630
      %1632 = vrot.lane.b32.xlu0 %v1575, 124
      %v1633 = vpop.permute.xlu0 %1632
      %1634 = vrot.lane.b32.xlu0 %v1576, 124
      %v1635 = vpop.permute.xlu0 %1634
      %1636 = vrot.lane.b32.xlu0 %v1577, 124
      %v1637 = vpop.permute.xlu0 %1636
      %v1638 = vsel %vm808, %v1623, %v1625
      %v1639 = vsel %vm808, %v1627, %v1629
      %v1640 = vsel %vm808, %v1631, %v1633
      %v1641 = vsel %vm808, %v1635, %v1637
      %v1654 = vsel %vm808, %v1625, %v1623
      %v1655 = vsel %vm808, %v1629, %v1627
      %v1656 = vsel %vm808, %v1633, %v1631
      %v1657 = vsel %vm808, %v1637, %v1635
      %1658 = vrot.lane.b32.xlu0 %v1570, 122
      %v1659 = vpop.permute.xlu0 %1658
      %1660 = vrot.lane.b32.xlu0 %v1571, 122
      %v1661 = vpop.permute.xlu0 %1660
      %1662 = vrot.lane.b32.xlu0 %v1572, 122
      %v1663 = vpop.permute.xlu0 %1662
      %1664 = vrot.lane.b32.xlu0 %v1573, 122
      %v1665 = vpop.permute.xlu0 %1664
      %1666 = vrot.lane.b32.xlu0 %v1574, 122
      %v1667 = vpop.permute.xlu0 %1666
      %1668 = vrot.lane.b32.xlu0 %v1575, 122
      %v1669 = vpop.permute.xlu0 %1668
      %1670 = vrot.lane.b32.xlu0 %v1576, 122
      %v1671 = vpop.permute.xlu0 %1670
      %1672 = vrot.lane.b32.xlu0 %v1577, 122
      %v1673 = vpop.permute.xlu0 %1672
      %vm1674 = vcmask 998400
      %v1675 = vsel %vm1674, %v1659, %v1661
      %v1676 = vsel %vm1674, %v1663, %v1665
      %v1677 = vsel %vm1674, %v1667, %v1669
      %v1678 = vsel %vm1674, %v1671, %v1673
      %v1691 = vsel %vm1674, %v1661, %v1659
      %v1692 = vsel %vm1674, %v1665, %v1663
      %v1693 = vsel %vm1674, %v1669, %v1667
      %v1694 = vsel %vm1674, %v1673, %v1671
      %1695 = vrot.lane.b32.xlu0 %v1570, 96
      %v1696 = vpop.permute.xlu0 %1695
      %1697 = vrot.lane.b32.xlu0 %v1571, 96
      %v1698 = vpop.permute.xlu0 %1697
      %1699 = vrot.lane.b32.xlu0 %v1572, 96
      %v1700 = vpop.permute.xlu0 %1699
      %1701 = vrot.lane.b32.xlu0 %v1573, 96
      %v1702 = vpop.permute.xlu0 %1701
      %1703 = vrot.lane.b32.xlu0 %v1574, 96
      %v1704 = vpop.permute.xlu0 %1703
      %1705 = vrot.lane.b32.xlu0 %v1575, 96
      %v1706 = vpop.permute.xlu0 %1705
      %1707 = vrot.lane.b32.xlu0 %v1576, 96
      %v1708 = vpop.permute.xlu0 %1707
      %1709 = vrot.lane.b32.xlu0 %v1577, 96
      %v1710 = vpop.permute.xlu0 %1709
      %v1711 = vsel %vm922, %v1696, %v1698
      %v1712 = vsel %vm922, %v1700, %v1702
      %v1713 = vsel %vm922, %v1704, %v1706
      %v1714 = vsel %vm922, %v1708, %v1710
      %v1727 = vsel %vm922, %v1698, %v1696
      %v1728 = vsel %vm922, %v1702, %v1700
      %v1729 = vsel %vm922, %v1706, %v1704
      %v1730 = vsel %vm922, %v1710, %v1708
      %1731 = vrot.lane.b32.xlu0 %v1570, 94
      %v1732 = vpop.permute.xlu0 %1731
      %1733 = vrot.lane.b32.xlu0 %v1571, 94
      %v1734 = vpop.permute.xlu0 %1733
      %1735 = vrot.lane.b32.xlu0 %v1572, 94
      %v1736 = vpop.permute.xlu0 %1735
      %1737 = vrot.lane.b32.xlu0 %v1573, 94
      %v1738 = vpop.permute.xlu0 %1737
      %1739 = vrot.lane.b32.xlu0 %v1574, 94
      %v1740 = vpop.permute.xlu0 %1739
      %1741 = vrot.lane.b32.xlu0 %v1575, 94
      %v1742 = vpop.permute.xlu0 %1741
      %1743 = vrot.lane.b32.xlu0 %v1576, 94
      %v1744 = vpop.permute.xlu0 %1743
      %1745 = vrot.lane.b32.xlu0 %v1577, 94
      %v1746 = vpop.permute.xlu0 %1745
      %v1747 = vsel %vm960, %v1732, %v1734
      %v1748 = vsel %vm960, %v1736, %v1738
      %v1749 = vsel %vm960, %v1740, %v1742
      %v1750 = vsel %vm960, %v1744, %v1746
      %v1763 = vsel %vm960, %v1734, %v1732
      %v1764 = vsel %vm960, %v1738, %v1736
      %v1765 = vsel %vm960, %v1742, %v1740
      %v1766 = vsel %vm960, %v1746, %v1744
      %1767 = vrot.lane.b32.xlu0 %v1570, 92
      %v1768 = vpop.permute.xlu0 %1767
      %1769 = vrot.lane.b32.xlu0 %v1571, 92
      %v1770 = vpop.permute.xlu0 %1769
      %1771 = vrot.lane.b32.xlu0 %v1572, 92
      %v1772 = vpop.permute.xlu0 %1771
      %1773 = vrot.lane.b32.xlu0 %v1573, 92
      %v1774 = vpop.permute.xlu0 %1773
      %1775 = vrot.lane.b32.xlu0 %v1574, 92
      %v1776 = vpop.permute.xlu0 %1775
      %1777 = vrot.lane.b32.xlu0 %v1575, 92
      %v1778 = vpop.permute.xlu0 %1777
      %1779 = vrot.lane.b32.xlu0 %v1576, 92
      %v1780 = vpop.permute.xlu0 %1779
      %1781 = vrot.lane.b32.xlu0 %v1577, 92
      %v1782 = vpop.permute.xlu0 %1781
      %v1783 = vsel %vm998, %v1768, %v1770
      %v1784 = vsel %vm998, %v1772, %v1774
      %v1785 = vsel %vm998, %v1776, %v1778
      %v1786 = vsel %vm998, %v1780, %v1782
      %v1799 = vsel %vm998, %v1770, %v1768
      %v1800 = vsel %vm998, %v1774, %v1772
      %v1801 = vsel %vm998, %v1778, %v1776
      %v1802 = vsel %vm998, %v1782, %v1780
      %1803 = vrot.lane.b32.xlu0 %v1570, 90
      %v1804 = vpop.permute.xlu0 %1803
      %1805 = vrot.lane.b32.xlu0 %v1571, 90
      %v1806 = vpop.permute.xlu0 %1805
      %1807 = vrot.lane.b32.xlu0 %v1572, 90
      %v1808 = vpop.permute.xlu0 %1807
      %1809 = vrot.lane.b32.xlu0 %v1573, 90
      %v1810 = vpop.permute.xlu0 %1809
      %1811 = vrot.lane.b32.xlu0 %v1574, 90
      %v1812 = vpop.permute.xlu0 %1811
      %1813 = vrot.lane.b32.xlu0 %v1575, 90
      %v1814 = vpop.permute.xlu0 %1813
      %1815 = vrot.lane.b32.xlu0 %v1576, 90
      %v1816 = vpop.permute.xlu0 %1815
      %1817 = vrot.lane.b32.xlu0 %v1577, 90
      %v1818 = vpop.permute.xlu0 %1817
      %vm1819 = vcmask 736256
      %v1820 = vsel %vm1819, %v1804, %v1806
      %v1821 = vsel %vm1819, %v1808, %v1810
      %v1822 = vsel %vm1819, %v1812, %v1814
      %v1823 = vsel %vm1819, %v1816, %v1818
      %v1836 = vsel %vm1819, %v1806, %v1804
      %v1837 = vsel %vm1819, %v1810, %v1808
      %v1838 = vsel %vm1819, %v1814, %v1812
      %v1839 = vsel %vm1819, %v1818, %v1816
      %1840 = vrot.lane.b32.xlu0 %v1570, 64
      %v1841 = vpop.permute.xlu0 %1840
      %1842 = vrot.lane.b32.xlu0 %v1571, 64
      %v1843 = vpop.permute.xlu0 %1842
      %1844 = vrot.lane.b32.xlu0 %v1572, 64
      %v1845 = vpop.permute.xlu0 %1844
      %1846 = vrot.lane.b32.xlu0 %v1573, 64
      %v1847 = vpop.permute.xlu0 %1846
      %1848 = vrot.lane.b32.xlu0 %v1574, 64
      %v1849 = vpop.permute.xlu0 %1848
      %1850 = vrot.lane.b32.xlu0 %v1575, 64
      %v1851 = vpop.permute.xlu0 %1850
      %1852 = vrot.lane.b32.xlu0 %v1576, 64
      %v1853 = vpop.permute.xlu0 %1852
      %1854 = vrot.lane.b32.xlu0 %v1577, 64
      %v1855 = vpop.permute.xlu0 %1854
      %v1856 = vsel %vm1112, %v1841, %v1843
      %v1857 = vsel %vm1112, %v1845, %v1847
      %v1858 = vsel %vm1112, %v1849, %v1851
      %v1859 = vsel %vm1112, %v1853, %v1855
      %v1872 = vsel %vm1112, %v1843, %v1841
      %v1873 = vsel %vm1112, %v1847, %v1845
      %v1874 = vsel %vm1112, %v1851, %v1849
      %v1875 = vsel %vm1112, %v1855, %v1853
      %1876 = vrot.lane.b32.xlu0 %v1570, 62
      %v1877 = vpop.permute.xlu0 %1876
      %1878 = vrot.lane.b32.xlu0 %v1571, 62
      %v1879 = vpop.permute.xlu0 %1878
      %1880 = vrot.lane.b32.xlu0 %v1572, 62
      %v1881 = vpop.permute.xlu0 %1880
      %1882 = vrot.lane.b32.xlu0 %v1573, 62
      %v1883 = vpop.permute.xlu0 %1882
      %1884 = vrot.lane.b32.xlu0 %v1574, 62
      %v1885 = vpop.permute.xlu0 %1884
      %1886 = vrot.lane.b32.xlu0 %v1575, 62
      %v1887 = vpop.permute.xlu0 %1886
      %1888 = vrot.lane.b32.xlu0 %v1576, 62
      %v1889 = vpop.permute.xlu0 %1888
      %1890 = vrot.lane.b32.xlu0 %v1577, 62
      %v1891 = vpop.permute.xlu0 %1890
      %v1892 = vsel %vm1150, %v1877, %v1879
      %v1893 = vsel %vm1150, %v1881, %v1883
      %v1894 = vsel %vm1150, %v1885, %v1887
      %v1895 = vsel %vm1150, %v1889, %v1891
      %v1908 = vsel %vm1150, %v1879, %v1877
      %v1909 = vsel %vm1150, %v1883, %v1881
      %v1910 = vsel %vm1150, %v1887, %v1885
      %v1911 = vsel %vm1150, %v1891, %v1889
      %1912 = vrot.lane.b32.xlu0 %v1570, 60
      %v1913 = vpop.permute.xlu0 %1912
      %1914 = vrot.lane.b32.xlu0 %v1571, 60
      %v1915 = vpop.permute.xlu0 %1914
      %1916 = vrot.lane.b32.xlu0 %v1572, 60
      %v1917 = vpop.permute.xlu0 %1916
      %1918 = vrot.lane.b32.xlu0 %v1573, 60
      %v1919 = vpop.permute.xlu0 %1918
      %1920 = vrot.lane.b32.xlu0 %v1574, 60
      %v1921 = vpop.permute.xlu0 %1920
      %1922 = vrot.lane.b32.xlu0 %v1575, 60
      %v1923 = vpop.permute.xlu0 %1922
      %1924 = vrot.lane.b32.xlu0 %v1576, 60
      %v1925 = vpop.permute.xlu0 %1924
      %1926 = vrot.lane.b32.xlu0 %v1577, 60
      %v1927 = vpop.permute.xlu0 %1926
      %v1928 = vsel %vm1188, %v1913, %v1915
      %v1929 = vsel %vm1188, %v1917, %v1919
      %v1930 = vsel %vm1188, %v1921, %v1923
      %v1931 = vsel %vm1188, %v1925, %v1927
      %v1944 = vsel %vm1188, %v1915, %v1913
      %v1945 = vsel %vm1188, %v1919, %v1917
      %v1946 = vsel %vm1188, %v1923, %v1921
      %v1947 = vsel %vm1188, %v1927, %v1925
      %1948 = vrot.lane.b32.xlu0 %v1570, 58
      %v1949 = vpop.permute.xlu0 %1948
      %1950 = vrot.lane.b32.xlu0 %v1571, 58
      %v1951 = vpop.permute.xlu0 %1950
      %1952 = vrot.lane.b32.xlu0 %v1572, 58
      %v1953 = vpop.permute.xlu0 %1952
      %1954 = vrot.lane.b32.xlu0 %v1573, 58
      %v1955 = vpop.permute.xlu0 %1954
      %1956 = vrot.lane.b32.xlu0 %v1574, 58
      %v1957 = vpop.permute.xlu0 %1956
      %1958 = vrot.lane.b32.xlu0 %v1575, 58
      %v1959 = vpop.permute.xlu0 %1958
      %1960 = vrot.lane.b32.xlu0 %v1576, 58
      %v1961 = vpop.permute.xlu0 %1960
      %1962 = vrot.lane.b32.xlu0 %v1577, 58
      %v1963 = vpop.permute.xlu0 %1962
      %vm1964 = vcmask 474112
      %v1965 = vsel %vm1964, %v1949, %v1951
      %v1966 = vsel %vm1964, %v1953, %v1955
      %v1967 = vsel %vm1964, %v1957, %v1959
      %v1968 = vsel %vm1964, %v1961, %v1963
      %v1981 = vsel %vm1964, %v1951, %v1949
      %v1982 = vsel %vm1964, %v1955, %v1953
      %v1983 = vsel %vm1964, %v1959, %v1957
      %v1984 = vsel %vm1964, %v1963, %v1961
      %1985 = vrot.lane.b32.xlu0 %v1570, 32
      %v1986 = vpop.permute.xlu0 %1985
      %1987 = vrot.lane.b32.xlu0 %v1571, 32
      %v1988 = vpop.permute.xlu0 %1987
      %1989 = vrot.lane.b32.xlu0 %v1572, 32
      %v1990 = vpop.permute.xlu0 %1989
      %1991 = vrot.lane.b32.xlu0 %v1573, 32
      %v1992 = vpop.permute.xlu0 %1991
      %1993 = vrot.lane.b32.xlu0 %v1574, 32
      %v1994 = vpop.permute.xlu0 %1993
      %1995 = vrot.lane.b32.xlu0 %v1575, 32
      %v1996 = vpop.permute.xlu0 %1995
      %1997 = vrot.lane.b32.xlu0 %v1576, 32
      %v1998 = vpop.permute.xlu0 %1997
      %1999 = vrot.lane.b32.xlu0 %v1577, 32
      %v2000 = vpop.permute.xlu0 %1999
      %vm2001 = vcmask 261120
      %v2002 = vsel %vm2001, %v1986, %v1988
      %v2003 = vsel %vm2001, %v1990, %v1992
      %v2004 = vsel %vm2001, %v1994, %v1996
      %v2005 = vsel %vm2001, %v1998, %v2000
      %v2018 = vsel %vm2001, %v1988, %v1986
      %v2019 = vsel %vm2001, %v1992, %v1990
      %v2020 = vsel %vm2001, %v1996, %v1994
      %v2021 = vsel %vm2001, %v2000, %v1998
      %2022 = vrot.lane.b32.xlu0 %v1570, 30
      %v2023 = vpop.permute.xlu0 %2022
      %2024 = vrot.lane.b32.xlu0 %v1571, 30
      %v2025 = vpop.permute.xlu0 %2024
      %2026 = vrot.lane.b32.xlu0 %v1572, 30
      %v2027 = vpop.permute.xlu0 %2026
      %2028 = vrot.lane.b32.xlu0 %v1573, 30
      %v2029 = vpop.permute.xlu0 %2028
      %2030 = vrot.lane.b32.xlu0 %v1574, 30
      %v2031 = vpop.permute.xlu0 %2030
      %2032 = vrot.lane.b32.xlu0 %v1575, 30
      %v2033 = vpop.permute.xlu0 %2032
      %2034 = vrot.lane.b32.xlu0 %v1576, 30
      %v2035 = vpop.permute.xlu0 %2034
      %2036 = vrot.lane.b32.xlu0 %v1577, 30
      %v2037 = vpop.permute.xlu0 %2036
      %vm2038 = vcmask 244736
      %v2039 = vsel %vm2038, %v2023, %v2025
      %v2040 = vsel %vm2038, %v2027, %v2029
      %v2041 = vsel %vm2038, %v2031, %v2033
      %v2042 = vsel %vm2038, %v2035, %v2037
      %v2055 = vsel %vm2038, %v2025, %v2023
      %v2056 = vsel %vm2038, %v2029, %v2027
      %v2057 = vsel %vm2038, %v2033, %v2031
      %v2058 = vsel %vm2038, %v2037, %v2035
      %2059 = vrot.lane.b32.xlu0 %v1570, 28
      %v2060 = vpop.permute.xlu0 %2059
      %2061 = vrot.lane.b32.xlu0 %v1571, 28
      %v2062 = vpop.permute.xlu0 %2061
      %2063 = vrot.lane.b32.xlu0 %v1572, 28
      %v2064 = vpop.permute.xlu0 %2063
      %2065 = vrot.lane.b32.xlu0 %v1573, 28
      %v2066 = vpop.permute.xlu0 %2065
      %2067 = vrot.lane.b32.xlu0 %v1574, 28
      %v2068 = vpop.permute.xlu0 %2067
      %2069 = vrot.lane.b32.xlu0 %v1575, 28
      %v2070 = vpop.permute.xlu0 %2069
      %2071 = vrot.lane.b32.xlu0 %v1576, 28
      %v2072 = vpop.permute.xlu0 %2071
      %2073 = vrot.lane.b32.xlu0 %v1577, 28
      %v2074 = vpop.permute.xlu0 %2073
      %vm2075 = vcmask 228352
      %v2076 = vsel %vm2075, %v2060, %v2062
      %v2077 = vsel %vm2075, %v2064, %v2066
      %v2078 = vsel %vm2075, %v2068, %v2070
      %v2079 = vsel %vm2075, %v2072, %v2074
      %v2092 = vsel %vm2075, %v2062, %v2060
      %v2093 = vsel %vm2075, %v2066, %v2064
      %v2094 = vsel %vm2075, %v2070, %v2068
      %v2095 = vsel %vm2075, %v2074, %v2072
      %2096 = vrot.lane.b32.xlu0 %v1570, 26
      %v2097 = vpop.permute.xlu0 %2096
      %2098 = vrot.lane.b32.xlu0 %v1571, 26
      %v2099 = vpop.permute.xlu0 %2098
      %2100 = vrot.lane.b32.xlu0 %v1572, 26
      %v2101 = vpop.permute.xlu0 %2100
      %2102 = vrot.lane.b32.xlu0 %v1573, 26
      %v2103 = vpop.permute.xlu0 %2102
      %2104 = vrot.lane.b32.xlu0 %v1574, 26
      %v2105 = vpop.permute.xlu0 %2104
      %2106 = vrot.lane.b32.xlu0 %v1575, 26
      %v2107 = vpop.permute.xlu0 %2106
      %2108 = vrot.lane.b32.xlu0 %v1576, 26
      %v2109 = vpop.permute.xlu0 %2108
      %2110 = vrot.lane.b32.xlu0 %v1577, 26
      %v2111 = vpop.permute.xlu0 %2110
      %vm2112 = vcmask 211968
      %v2113 = vsel %vm2112, %v2097, %v2099
      %v2114 = vsel %vm2112, %v2101, %v2103
      %v2115 = vsel %vm2112, %v2105, %v2107
      %v2116 = vsel %vm2112, %v2109, %v2111
      %v2129 = vsel %vm2112, %v2099, %v2097
      %v2130 = vsel %vm2112, %v2103, %v2101
      %v2131 = vsel %vm2112, %v2107, %v2105
      %v2132 = vsel %vm2112, %v2111, %v2109
      %v2133 = vld [vmem:[%s5] sm:$0xff]
      %v2134 = vld [vmem:[%s5 + $0x8] sm:$0xff]
      %v2135 = vld [vmem:[%s5 + $0x10] sm:$0xff]
      %v2136 = vld [vmem:[%s5 + $0x18] sm:$0xff]
      %v2137 = vld [vmem:[%s5 + $0x20] sm:$0xff]
      %v2138 = vld [vmem:[%s5 + $0x28] sm:$0xff]
      %v2139 = vld [vmem:[%s5 + $0x30] sm:$0xff]
      %v2140 = vld [vmem:[%s5 + $0x38] sm:$0xff]
      %v2141 = vld [vmem:[%s5 + $0x40] sm:$0xff]
      %v2142 = vld [vmem:[%s5 + $0x48] sm:$0xff]
      %v2143 = vld [vmem:[%s5 + $0x50] sm:$0xff]
      %v2144 = vld [vmem:[%s5 + $0x58] sm:$0xff]
      %v2145 = vld [vmem:[%s5 + $0x60] sm:$0xff]
      %v2146 = vld [vmem:[%s5 + $0x68] sm:$0xff]
      %v2147 = vld [vmem:[%s5 + $0x70] sm:$0xff]
      %v2148 = vld [vmem:[%s5 + $0x78] sm:$0xff]
      %v2149 = vld [vmem:[%s5 + $0x80] sm:$0xff]
      %v2150 = vld [vmem:[%s5 + $0x88] sm:$0xff]
      %v2151 = vld [vmem:[%s5 + $0x90] sm:$0xff]
      %v2152 = vld [vmem:[%s5 + $0x98] sm:$0xff]
      %v2153 = vld [vmem:[%s5 + $0xa0] sm:$0xff]
      %v2154 = vld [vmem:[%s5 + $0xa8] sm:$0xff]
      %v2155 = vld [vmem:[%s5 + $0xb0] sm:$0xff]
      %v2156 = vld [vmem:[%s5 + $0xb8] sm:$0xff]
      %v2157 = vld [vmem:[%s5 + $0xc0] sm:$0x3]
      %v2158 = vld [vmem:[%s5 + $0xc8] sm:$0x3]
      %v2159 = vld [vmem:[%s5 + $0xd0] sm:$0x3]
      %v2160 = vld [vmem:[%s5 + $0xd8] sm:$0x3]
      %v2161 = vld [vmem:[%s6] sm:$0xff]
      %v2162 = vld [vmem:[%s6 + $0x8] sm:$0xff]
      %v2163 = vld [vmem:[%s6 + $0x10] sm:$0xff]
      %v2164 = vld [vmem:[%s6 + $0x18] sm:$0xff]
      %v2165 = vld [vmem:[%s6 + $0x20] sm:$0xff]
      %v2166 = vld [vmem:[%s6 + $0x28] sm:$0xff]
      %v2167 = vld [vmem:[%s6 + $0x30] sm:$0x3]
      %2169 = vset.pattern.permute.xlu0 0
      %2170 = vperm.xlu0 %2169, %v2161
      %v2171 = vpop.permute.xlu0 %2170
      %2174 = vset.pattern.permute.xlu0 0
      %2175 = vperm.xlu0 %2174, %v2162
      %v2176 = vpop.permute.xlu0 %2175
      %2179 = vset.pattern.permute.xlu0 0
      %2180 = vperm.xlu0 %2179, %v2163
      %v2181 = vpop.permute.xlu0 %2180
      %2184 = vset.pattern.permute.xlu0 0
      %2185 = vperm.xlu0 %2184, %v2164
      %v2186 = vpop.permute.xlu0 %2185
      %2189 = vset.pattern.permute.xlu0 0
      %2190 = vperm.xlu0 %2189, %v2165
      %v2191 = vpop.permute.xlu0 %2190
      %2194 = vset.pattern.permute.xlu0 0
      %2195 = vperm.xlu0 %2194, %v2166
      %v2196 = vpop.permute.xlu0 %2195
      %2199 = vset.pattern.permute.xlu0 0
      %2200 = vperm.xlu0 %2199, %v2167
      %v2201 = vpop.permute.xlu0 %2200
      %2203 = vmatprep.subr.mxu0 %v1571
      %2204 = vmatpush1.msra.mxu0 %v1570
      %2205 = vmatprep.subr.mxu0 %v1573
      %2206 = vmatpush1.msra.mxu0 %v1572
      %2207 = vmatprep.subr.mxu0 %v1575
      %2208 = vmatpush1.msra.mxu0 %v1574
      %2209 = vmatprep.subr.mxu0 %v1577
      %2210 = vmatpush1.msra.mxu0 %v1576
      %2211 = vmatprep.subr.mxu0 %v1618
      %2212 = vmatpush1.msra.mxu0 %v1602
      %2213 = vmatprep.subr.mxu0 %v1619
      %2214 = vmatpush1.msra.mxu0 %v1603
      %2215 = vmatprep.subr.mxu0 %v1620
      %2216 = vmatpush1.msra.mxu0 %v1604
      %2217 = vmatprep.subr.mxu0 %v1621
      %2218 = vmatpush1.msra.mxu0 %v1605
      %2219 = vmatprep.subr.mxu0 %v1654
      %2220 = vmatpush1.msra.mxu0 %v1638
      %2221 = vmatprep.subr.mxu0 %v1655
      %2222 = vmatpush1.msra.mxu0 %v1639
      %2223 = vmatprep.subr.mxu0 %v1656
      %2224 = vmatpush1.msra.mxu0 %v1640
      %2225 = vmatprep.subr.mxu0 %v1657
      %2226 = vmatpush1.msra.mxu0 %v1641
      %2227 = vmatprep.subr.mxu0 %v1691
      %2228 = vmatpush1.msra.mxu0 %v1675
      %2229 = vmatprep.subr.mxu0 %v1692
      %2230 = vmatpush1.msra.mxu0 %v1676
      %2231 = vmatprep.subr.mxu0 %v1693
      %2232 = vmatpush1.msra.mxu0 %v1677
      %2233 = vmatprep.subr.mxu0 %v1694
      %2234 = vmatpush1.msra.mxu0 %v1678
      %2235 = vmatprep.subr.mxu0 %v1727
      %2236 = vmatpush1.msra.mxu0 %v1711
      %2237 = vmatprep.subr.mxu0 %v1728
      %2238 = vmatpush1.msra.mxu0 %v1712
      %2239 = vmatprep.subr.mxu0 %v1729
      %2240 = vmatpush1.msra.mxu0 %v1713
      %2241 = vmatprep.subr.mxu0 %v1730
      %2242 = vmatpush1.msra.mxu0 %v1714
      %2243 = vmatprep.subr.mxu0 %v1763
      %2244 = vmatpush1.msra.mxu0 %v1747
      %2245 = vmatprep.subr.mxu0 %v1764
      %2246 = vmatpush1.msra.mxu0 %v1748
      %2247 = vmatprep.subr.mxu0 %v1765
      %2248 = vmatpush1.msra.mxu0 %v1749
      %2249 = vmatprep.subr.mxu0 %v1766
      %2250 = vmatpush1.msra.mxu0 %v1750
      %2251 = vmatprep.subr.mxu0 %v1799
      %2252 = vmatpush1.msra.mxu0 %v1783
      %2253 = vmatprep.subr.mxu0 %v1800
      %2254 = vmatpush1.msra.mxu0 %v1784
      %2255 = vmatprep.subr.mxu0 %v1801
      %2256 = vmatpush1.msra.mxu0 %v1785
      %2257 = vmatprep.subr.mxu0 %v1802
      %2258 = vmatpush1.msra.mxu0 %v1786
      %2259 = vmatprep.subr.mxu0 %v1836
      %2260 = vmatpush1.msra.mxu0 %v1820
      %2261 = vmatprep.subr.mxu0 %v1837
      %2262 = vmatpush1.msra.mxu0 %v1821
      %2263 = vmatprep.subr.mxu0 %v1838
      %2264 = vmatpush1.msra.mxu0 %v1822
      %2265 = vmatprep.subr.mxu0 %v1839
      %2266 = vmatpush1.msra.mxu0 %v1823
      %2267 = vmatprep.mubr.f32.mxu0 %v2134
      %2268 = vmatmul.mubr.f32.gmra.mrb[0].mxu0 %v2133
      %v2269 = vpop.f32.mrb[0].mxu0
      %v2270 = vadd.f32 %v2171, %v2269
      %v2271 = vpop.f32.mrb[0].mxu0
      %v2272 = vadd.f32 %v2171, %v2271
      %2273 = vmatprep.mubr.f32.mxu0 %v2138
      %2274 = vmatmul.mubr.f32.gmra.mrb[0].mxu0 %v2137
      %v2275 = vpop.f32.mrb[0].mxu0
      %v2276 = vadd.f32 %v2176, %v2275
      %v2277 = vpop.f32.mrb[0].mxu0
      %v2278 = vadd.f32 %v2176, %v2277
      %2279 = vmatprep.mubr.f32.mxu0 %v2142
      %2280 = vmatmul.mubr.f32.gmra.mrb[0].mxu0 %v2141
      %v2281 = vpop.f32.mrb[0].mxu0
      %v2282 = vadd.f32 %v2181, %v2281
      %v2283 = vpop.f32.mrb[0].mxu0
      %v2284 = vadd.f32 %v2181, %v2283
      %2285 = vmatprep.mubr.f32.mxu0 %v2146
      %2286 = vmatmul.mubr.f32.gmra.mrb[0].mxu0 %v2145
      %v2287 = vpop.f32.mrb[0].mxu0
      %v2288 = vadd.f32 %v2186, %v2287
      %v2289 = vpop.f32.mrb[0].mxu0
      %v2290 = vadd.f32 %v2186, %v2289
      %2291 = vmatprep.mubr.f32.mxu0 %v2150
      %2292 = vmatmul.mubr.f32.gmra.mrb[0].mxu0 %v2149
      %v2293 = vpop.f32.mrb[0].mxu0
      %v2294 = vadd.f32 %v2191, %v2293
      %v2295 = vpop.f32.mrb[0].mxu0
      %v2296 = vadd.f32 %v2191, %v2295
      %2297 = vmatprep.mubr.f32.mxu0 %v2154
      %2298 = vmatmul.mubr.f32.gmra.mrb[0].mxu0 %v2153
      %v2299 = vpop.f32.mrb[0].mxu0
      %v2300 = vadd.f32 %v2196, %v2299
      %v2301 = vpop.f32.mrb[0].mxu0
      %v2302 = vadd.f32 %v2196, %v2301
      %2303 = vmatprep.mubr.f32.mxu0 %v2158
      %2304 = vmatmul.mubr.f32.gmra.mrb[0].mxu0 %v2157
      %v2305 = vpop.f32.mrb[0].mxu0
      %v2306 = vadd.f32 %v2201, %v2305
      %v2307 = vpop.f32.mrb[0].mxu0
      %v2308 = vadd.f32 %v2201, %v2307
      %2309 = vdwg.mxu0
      %2310 = vmatprep.subr.mxu0 %v1872
      %2311 = vmatpush1.msra.mxu0 %v1856
      %2312 = vmatprep.subr.mxu0 %v1873
      %2313 = vmatpush1.msra.mxu0 %v1857
      %2314 = vmatprep.subr.mxu0 %v1874
      %2315 = vmatpush1.msra.mxu0 %v1858
      %2316 = vmatprep.subr.mxu0 %v1875
      %2317 = vmatpush1.msra.mxu0 %v1859
      %2318 = vmatprep.subr.mxu0 %v1908
      %2319 = vmatpush1.msra.mxu0 %v1892
      %2320 = vmatprep.subr.mxu0 %v1909
      %2321 = vmatpush1.msra.mxu0 %v1893
      %2322 = vmatprep.subr.mxu0 %v1910
      %2323 = vmatpush1.msra.mxu0 %v1894
      %2324 = vmatprep.subr.mxu0 %v1911
      %2325 = vmatpush1.msra.mxu0 %v1895
      %2326 = vmatprep.subr.mxu0 %v1944
      %2327 = vmatpush1.msra.mxu0 %v1928
      %2328 = vmatprep.subr.mxu0 %v1945
      %2329 = vmatpush1.msra.mxu0 %v1929
      %2330 = vmatprep.subr.mxu0 %v1946
      %2331 = vmatpush1.msra.mxu0 %v1930
      %2332 = vmatprep.subr.mxu0 %v1947
      %2333 = vmatpush1.msra.mxu0 %v1931
      %2334 = vmatprep.subr.mxu0 %v1981
      %2335 = vmatpush1.msra.mxu0 %v1965
      %2336 = vmatprep.subr.mxu0 %v1982
      %2337 = vmatpush1.msra.mxu0 %v1966
      %2338 = vmatprep.subr.mxu0 %v1983
      %2339 = vmatpush1.msra.mxu0 %v1967
      %2340 = vmatprep.subr.mxu0 %v1984
      %2341 = vmatpush1.msra.mxu0 %v1968
      %2342 = vmatprep.subr.mxu0 %v2018
      %2343 = vmatpush1.msra.mxu0 %v2002
      %2344 = vmatprep.subr.mxu0 %v2019
      %2345 = vmatpush1.msra.mxu0 %v2003
      %2346 = vmatprep.subr.mxu0 %v2020
      %2347 = vmatpush1.msra.mxu0 %v2004
      %2348 = vmatprep.subr.mxu0 %v2021
      %2349 = vmatpush1.msra.mxu0 %v2005
      %2350 = vmatprep.subr.mxu0 %v2055
      %2351 = vmatpush1.msra.mxu0 %v2039
      %2352 = vmatprep.subr.mxu0 %v2056
      %2353 = vmatpush1.msra.mxu0 %v2040
      %2354 = vmatprep.subr.mxu0 %v2057
      %2355 = vmatpush1.msra.mxu0 %v2041
      %2356 = vmatprep.subr.mxu0 %v2058
      %2357 = vmatpush1.msra.mxu0 %v2042
      %2358 = vmatprep.subr.mxu0 %v2092
      %2359 = vmatpush1.msra.mxu0 %v2076
      %2360 = vmatprep.subr.mxu0 %v2093
      %2361 = vmatpush1.msra.mxu0 %v2077
      %2362 = vmatprep.subr.mxu0 %v2094
      %2363 = vmatpush1.msra.mxu0 %v2078
      %2364 = vmatprep.subr.mxu0 %v2095
      %2365 = vmatpush1.msra.mxu0 %v2079
      %2366 = vmatprep.subr.mxu0 %v2129
      %2367 = vmatpush1.msra.mxu0 %v2113
      %2368 = vmatprep.subr.mxu0 %v2130
      %2369 = vmatpush1.msra.mxu0 %v2114
      %2370 = vmatprep.subr.mxu0 %v2131
      %2371 = vmatpush1.msra.mxu0 %v2115
      %2372 = vmatprep.subr.mxu0 %v2132
      %2373 = vmatpush1.msra.mxu0 %v2116
      %2374 = vmatprep.mubr.f32.mxu0 %v2136
      %2375 = vmatmul.mubr.f32.gmra.mrb[0].mxu0 %v2135
      %v2376 = vpop.f32.mrb[0].mxu0
      %v2377 = vadd.f32 %v2270, %v2376
      %v2378 = vpop.f32.mrb[0].mxu0
      %v2379 = vadd.f32 %v2272, %v2378
      %2380 = vmatprep.mubr.f32.mxu0 %v2140
      %2381 = vmatmul.mubr.f32.gmra.mrb[0].mxu0 %v2139
      %v2382 = vpop.f32.mrb[0].mxu0
      %v2383 = vadd.f32 %v2276, %v2382
      %v2384 = vpop.f32.mrb[0].mxu0
      %v2385 = vadd.f32 %v2278, %v2384
      %2386 = vmatprep.mubr.f32.mxu0 %v2144
      %2387 = vmatmul.mubr.f32.gmra.mrb[0].mxu0 %v2143
      %v2388 = vpop.f32.mrb[0].mxu0
      %v2389 = vadd.f32 %v2282, %v2388
      %v2390 = vpop.f32.mrb[0].mxu0
      %v2391 = vadd.f32 %v2284, %v2390
      %2392 = vmatprep.mubr.f32.mxu0 %v2148
      %2393 = vmatmul.mubr.f32.gmra.mrb[0].mxu0 %v2147
      %v2394 = vpop.f32.mrb[0].mxu0
      %v2395 = vadd.f32 %v2288, %v2394
      %v2396 = vpop.f32.mrb[0].mxu0
      %v2397 = vadd.f32 %v2290, %v2396
      %2398 = vmatprep.mubr.f32.mxu0 %v2152
      %2399 = vmatmul.mubr.f32.gmra.mrb[0].mxu0 %v2151
      %v2400 = vpop.f32.mrb[0].mxu0
      %v2401 = vadd.f32 %v2294, %v2400
      %v2402 = vpop.f32.mrb[0].mxu0
      %v2403 = vadd.f32 %v2296, %v2402
      %2404 = vmatprep.mubr.f32.mxu0 %v2156
      %2405 = vmatmul.mubr.f32.gmra.mrb[0].mxu0 %v2155
      %v2406 = vpop.f32.mrb[0].mxu0
      %v2407 = vadd.f32 %v2300, %v2406
      %v2408 = vpop.f32.mrb[0].mxu0
      %v2409 = vadd.f32 %v2302, %v2408
      %2410 = vmatprep.mubr.f32.mxu0 %v2160
      %2411 = vmatmul.mubr.f32.gmra.mrb[0].mxu0 %v2159
      %v2412 = vpop.f32.mrb[0].mxu0
      %v2413 = vadd.f32 %v2306, %v2412
      %v2414 = vpop.f32.mrb[0].mxu0
      %v2415 = vadd.f32 %v2308, %v2414
      %2416 = vdwg.mxu0
      %v2417 = vmax.f32 %v2377, 0.0
      %v2418 = vmax.f32 %v2379, 0.0
      %v2419 = vmax.f32 %v2383, 0.0
      %v2420 = vmax.f32 %v2385, 0.0
      %v2421 = vmax.f32 %v2389, 0.0
      %v2422 = vmax.f32 %v2391, 0.0
      %v2423 = vmax.f32 %v2395, 0.0
      %v2424 = vmax.f32 %v2397, 0.0
      %v2425 = vmax.f32 %v2401, 0.0
      %v2426 = vmax.f32 %v2403, 0.0
      %v2427 = vmax.f32 %v2407, 0.0
      %v2428 = vmax.f32 %v2409, 0.0
      %v2429 = vmax.f32 %v2413, 0.0
      %v2430 = vmax.f32 %v2415, 0.0
      %v2431 = vld [vmem:[%s7] sm:$0xff]
      %v2432 = vld [vmem:[%s7 + $0x8] sm:$0x3]
      %v2433 = vld [vmem:[%s8] sm:$0xff]
      %v2434 = vld [vmem:[%s8 + $0x8] sm:$0x3]
      %2436 = vset.pattern.permute.xlu0 0
      %2437 = vperm.xlu0 %2436, %v2433
      %v2438 = vpop.permute.xlu0 %2437
      %2441 = vset.pattern.permute.xlu0 0
      %2442 = vperm.xlu0 %2441, %v2434
      %v2443 = vpop.permute.xlu0 %2442
      %vm2445 = vcmask 408576
      %v2447 = vsel %vm2445, %v2431, 0
      %v2450 = vsel %vm2445, %v2432, 0
      %vm2452 = vcmask 1041408
      %v2454 = vsel %vm2452, %v2429, 0
      %v2457 = vsel %vm2452, %v2430, 0
      %2459 = vmatprep.subr.mxu0 %v2418
      %2460 = vmatpush1.msra.mxu0 %v2417
      %2461 = vmatprep.subr.mxu0 %v2420
      %2462 = vmatpush1.msra.mxu0 %v2419
      %2463 = vmatprep.subr.mxu0 %v2422
      %2464 = vmatpush1.msra.mxu0 %v2421
      %2465 = vmatprep.subr.mxu0 %v2424
      %2466 = vmatpush1.msra.mxu0 %v2423
      %2467 = vmatprep.subr.mxu0 %v2426
      %2468 = vmatpush1.msra.mxu0 %v2425
      %2469 = vmatprep.subr.mxu0 %v2428
      %2470 = vmatpush1.msra.mxu0 %v2427
      %2471 = vmatprep.subr.mxu0 %v2457
      %2472 = vmatpush1.msra.mxu0 %v2454
      %2473 = vmatprep.subr.mxu0 0.0
      %2474 = vmatpush1.msra.mxu0 0.0
      %2475 = vmatprep.subr.mxu0 0.0
      %2476 = vmatpush1.msra.mxu0 0.0
      %2477 = vmatprep.subr.mxu0 0.0
      %2478 = vmatpush1.msra.mxu0 0.0
      %2479 = vmatprep.subr.mxu0 0.0
      %2480 = vmatpush1.msra.mxu0 0.0
      %2481 = vmatprep.subr.mxu0 0.0
      %2482 = vmatpush1.msra.mxu0 0.0
      %2483 = vmatprep.subr.mxu0 0.0
      %2484 = vmatpush1.msra.mxu0 0.0
      %2485 = vmatprep.subr.mxu0 0.0
      %2486 = vmatpush1.msra.mxu0 0.0
      %2487 = vmatprep.subr.mxu0 0.0
      %2488 = vmatpush1.msra.mxu0 0.0
      %2489 = vmatprep.subr.mxu0 0.0
      %2490 = vmatpush1.msra.mxu0 0.0
      %2491 = vmatprep.subr.mxu0 0.0
      %2492 = vmatpush1.msra.mxu0 0.0
      %2493 = vmatprep.subr.mxu0 0.0
      %2494 = vmatpush1.msra.mxu0 0.0
      %2495 = vmatprep.subr.mxu0 0.0
      %2496 = vmatpush1.msra.mxu0 0.0
      %2497 = vmatprep.subr.mxu0 0.0
      %2498 = vmatpush1.msra.mxu0 0.0
      %2499 = vmatprep.subr.mxu0 0.0
      %2500 = vmatpush1.msra.mxu0 0.0
      %2501 = vmatprep.subr.mxu0 0.0
      %2502 = vmatpush1.msra.mxu0 0.0
      %2503 = vmatprep.subr.mxu0 0.0
      %2504 = vmatpush1.msra.mxu0 0.0
      %2505 = vmatprep.subr.mxu0 0.0
      %2506 = vmatpush1.msra.mxu0 0.0
      %2507 = vmatprep.subr.mxu0 0.0
      %2508 = vmatpush1.msra.mxu0 0.0
      %2509 = vmatprep.subr.mxu0 0.0
      %2510 = vmatpush1.msra.mxu0 0.0
      %2511 = vmatprep.subr.mxu0 0.0
      %2512 = vmatpush1.msra.mxu0 0.0
      %2513 = vmatprep.subr.mxu0 0.0
      %2514 = vmatpush1.msra.mxu0 0.0
      %2515 = vmatprep.subr.mxu0 0.0
      %2516 = vmatpush1.msra.mxu0 0.0
      %2517 = vmatprep.subr.mxu0 0.0
      %2518 = vmatpush1.msra.mxu0 0.0
      %2519 = vmatprep.subr.mxu0 0.0
      %2520 = vmatpush1.msra.mxu0 0.0
      %2521 = vmatprep.subr.mxu0 0.0
      %2522 = vmatpush1.msra.mxu0 0.0
      %2523 = vmatprep.mubr.f32.mxu0 0.0
      %2524 = vmatmul.mubr.f32.gmra.mrb[0].mxu0 %v2447
      %v2525 = vpop.f32.mrb[0].mxu0
      %v2526 = vadd.f32 %v2438, %v2525
      %v2527 = vpop.f32.mrb[0].mxu0
      %v2528 = vadd.f32 %v2438, %v2527
      %2529 = vmatprep.mubr.f32.mxu0 0.0
      %2530 = vmatmul.mubr.f32.gmra.mrb[0].mxu0 %v2450
      %v2531 = vpop.f32.mrb[0].mxu0
      %v2532 = vadd.f32 %v2443, %v2531
      %v2533 = vpop.f32.mrb[0].mxu0
      %v2534 = vadd.f32 %v2443, %v2533
      %2535 = vdwg.mxu0
      %v2536 = vsel %vm2452, %v2532, -inf
      %v2537 = vmax.f32 %v2526, %v2536
      %v2538 = vrot.slane %v2537, 4
      %v2539 = vmax.f32 %v2537, %v2538
      %v2540 = vrot.slane %v2539, 2
      %v2541 = vmax.f32 %v2539, %v2540
      %v2542 = vrot.slane %v2541, 1
      %v2543 = vmax.f32 %v2541, %v2542
      %v2544 = vsel %vm2452, %v2534, -inf
      %v2545 = vmax.f32 %v2528, %v2544
      %v2546 = vrot.slane %v2545, 4
      %v2547 = vmax.f32 %v2545, %v2546
      %v2548 = vrot.slane %v2547, 2
      %v2549 = vmax.f32 %v2547, %v2548
      %v2550 = vrot.slane %v2549, 1
      %v2551 = vmax.f32 %v2549, %v2550
      %v2552 = vsub.f32 %v2526, %v2543
      %v2553 = vsub.f32 %v2528, %v2551
      %v2554 = vsub.f32 %v2532, %v2543
      %v2555 = vsub.f32 %v2534, %v2551
      %v2556 = vmul.f32 %v2552, 1.442695
      %v2557 = vpow.pop %v2556
      %v2558 = vmul.f32 %v2553, 1.442695
      %v2559 = vpow.pop %v2558
      %v2560 = vmul.f32 %v2554, 1.442695
      %v2561 = vpow.pop %v2560
      %v2562 = vmul.f32 %v2555, 1.442695
      %v2563 = vpow.pop %v2562
      %v2564 = vsel %vm2452, %v2561, 0.0
      %v2565 = vadd.f32 %v2557, %v2564
      %v2566 = vrot.slane %v2565, 4
      %v2567 = vadd.f32 %v2565, %v2566
      %v2568 = vrot.slane %v2567, 2
      %v2569 = vadd.f32 %v2567, %v2568
      %v2570 = vrot.slane %v2569, 1
      %v2571 = vadd.f32 %v2569, %v2570
      %v2572 = vsel %vm2452, %v2563, 0.0
      %v2573 = vadd.f32 %v2559, %v2572
      %v2574 = vrot.slane %v2573, 4
      %v2575 = vadd.f32 %v2573, %v2574
      %v2576 = vrot.slane %v2575, 2
      %v2577 = vadd.f32 %v2575, %v2576
      %v2578 = vrot.slane %v2577, 1
      %v2579 = vadd.f32 %v2577, %v2578
      %v2580 = vlog2.pop %v2571
      %v2581 = vmul.f32 %v2580, 0.6931472
      %v2582 = vlog2.pop %v2579
      %v2583 = vmul.f32 %v2582, 0.6931472
      %v2584 = vsub.f32 %v2552, %v2581
      %v2585 = vsub.f32 %v2553, %v2583
      %v2586 = vsub.f32 %v2554, %v2581
      %v2587 = vsub.f32 %v2555, %v2583
      %2588 = vst [vmem:[%s332] sm:$0xff] %v2584
      %2589 = vst [vmem:[%s332 + $0x8] sm:$0xff] %v2585
      %2590 = vst [vmem:[%s332 + $0x10] sm:$0x3] %v2586
      %2591 = vst [vmem:[%s332 + $0x18] sm:$0x3] %v2587
      %p2592 = scmp.lt.s32.totalorder %s20, 1
      %s2593 = scalar_select %p2592, %s20, 1
      %s2594 = smul.addr %s2593, 4
      %s2595 = smul.addr %s2594, 8
      %s2596 = scalar_lea.vmem %s9, %s2595
      // Predicated region
      $region57: #{mnist_forward.1} parent=55 // pred_check
        %p2597 = pneg %p232
      $region58: #{mnist_forward.1} parent=55 // pred_check_branch
        %2599 = sbr.rel (%p2597) target = $region60
      $region59: #{mnist_forward.1} parent=55 // pred_region
        _
      $region60: #{mnist_forward.1} parent=55 // pred_fallthru
        _
    $region56: #{mnist_forward.1} parent=5 // pred_fallthru
      _
    %p2600 = scmp.le.s32.totalorder 2, %s15
    // Predicated region
    $region61: #{mnist_forward.1} parent=5 // pred_check
      %p2601 = pneg %p2600
    $region62: #{mnist_forward.1} parent=5 // pred_check_branch
      %2603 = sbr.rel (%p2601) target = $region64
    $region63: #{mnist_forward.1} parent=5 // pred_region
      %s2604 = ssub.s32 %s15, 2
      // Predicated region
      $region65: #{mnist_forward.1} parent=63 // pred_check
        %p2605 = pneg %p238
      $region66: #{mnist_forward.1} parent=63 // pred_check_branch
        %2607 = sbr.rel (%p2605) target = $region68
      $region67: #{mnist_forward.1} parent=63 // pred_region
        %p2608 = scmp.lt.s32.totalorder %s21, 1
        %s2609 = scalar_select %p2608, %s21, 1
        %s2610 = smul.addr %s2609, 4
        %s2611 = smul.addr %s2610, 8
        %s2612 = scalar_lea.vmem %s9, %s2611
      $region68: #{mnist_forward.1} parent=63 // pred_fallthru
        _
    $region64: #{mnist_forward.1} parent=5 // pred_fallthru
      _
  $region6: #{mnist_forward.1} parent=0 // loop_footer
    %s19 = sadd.s32 1, %s15
  $region7: #{mnist_forward.1} parent=0 // loop_footer_branch
    %14 = sbr.rel target = $region3
  $region8: #{mnist_forward.1} parent=0 // loop_exit
    _

</llo_original>
